<compile_context>
chip_gen: v7x
topology: tpu7x:2x2x1
jax: 0.10.0
libtpu: 0.0.40
codegen_flags: <defaults>
</compile_context>

<pallas_src>
import functools

import jax
import jax.numpy as jnp
from jax import lax
from jax.experimental import pallas as pl
from jax.experimental.pallas import tpu as pltpu


def _round_up(x, m):
    return (x + m - 1) // m * m


# ----------------------------------------------------------------------------
# Fused rollout kernel: one grid step = one (batch element, timestep).
# ----------------------------------------------------------------------------
def _fused_rollout_kernel(sat_ref, clim_ref, dem_ref, *refs, H, W, kh, kw,
                          context_length, chs, cts, ct_pads):
    """refs = [w_0, b_0, ..., w_{L-1}, b_{L-1},          # inputs (VMEM resident)
               preds_ref,                                 # output
               h_0, c_0, P_0, ..., h_{L-1}, c_{L-1}, P_{L-1}]  # scratch
    h/c: (ch, H*W) f32 recurrent state; P: (ct_pad, H*W + 2*(ph*W+pw)) bf16
    flat zero-padded [x, h] buffer (the conv halo / channel padding stays 0).
    """
    n_layers = len(chs)
    w_refs = [refs[2 * l + 0] for l in range(n_layers)]
    b_refs = [refs[2 * l + 1] for l in range(n_layers)]
    preds_ref = refs[2 * n_layers]
    sc = refs[2 * n_layers + 1:]
    h_refs = [sc[3 * l + 0] for l in range(n_layers)]
    c_refs = [sc[3 * l + 1] for l in range(n_layers)]
    p_refs = [sc[3 * l + 2] for l in range(n_layers)]

    t = pl.program_id(1)
    HW = H * W
    ph, pw = kh // 2, kw // 2
    pad = ph * W + pw              # flat zero pad on each side of the comb

    # New batch element -> zero recurrent state and the padded comb scratch
    # (halo / channel-padding regions stay zero; only interiors are rewritten).
    @pl.when(t == 0)
    def _init():
        for l in range(n_layers):
            h_refs[l][...] = jnp.zeros_like(h_refs[l])
            c_refs[l][...] = jnp.zeros_like(c_refs[l])
            p_refs[l][...] = jnp.zeros_like(p_refs[l])

    # Horizontal-validity masks per tap column offset (shared by all layers):
    # flat shifts wrap across image rows; wrapped lanes must read as zero pad.
    col = lax.broadcasted_iota(jnp.int32, (1, HW), 1) % W
    col_masks = []
    for dx in range(kw):
        if dx == pw:
            col_masks.append(None)                 # centered tap: always valid
        else:
            col_masks.append((col >= pw - dx) & (col < W + pw - dx))

    # Layer-0 input: satellite frame (context phase) or relu(previous
    # prediction) (autoregressive phase), plus dem and climate channels.
    frame = jnp.where(t < context_length, sat_ref[0, 0],
                      jnp.maximum(h_refs[-1][...], 0.0))           # (4, HW)
    x = jnp.concatenate([frame, dem_ref[0], clim_ref[0, 0]], axis=0)

    for l in range(n_layers):
        ch, ct, ct_pad = chs[l], cts[l], ct_pads[l]

        # [x, h] concat cast to bf16, written into the zero-padded flat comb.
        pieces = [x.astype(jnp.bfloat16), h_refs[l][...].astype(jnp.bfloat16)]
        if ct_pad > ct:
            pieces.append(jnp.zeros((ct_pad - ct, HW), jnp.bfloat16))
        comb = jnp.concatenate(pieces, axis=0)                     # (ct_pad, HW)
        p_refs[l][:, pad:pad + HW] = comb

        # im2col: each conv tap is a shifted flat slice of the padded comb;
        # horizontally out-of-bounds (row-wrapped) lanes are masked to zero.
        taps = []
        for dy in range(kh):
            for dx in range(kw):
                off = dy * W + dx
                p = p_refs[l][:, off:off + HW]                     # (ct_pad, HW)
                if col_masks[dx] is not None:
                    p = jnp.where(col_masks[dx], p, jnp.zeros_like(p))
                taps.append(p)
        patches = jnp.concatenate(taps, axis=0)          # (kh*kw*ct_pad, HW) bf16

        # Single fused-K MXU matmul (accumulation inside the MXU), f32 result
        # seeded with the bias.
        acc = jnp.dot(w_refs[l][...], patches,
                      preferred_element_type=jnp.float32) + b_refs[l][...]

        # Gate nonlinearities in ONE full-width EUP pass:
        #   rows [0, 3*ch)  (i, f, o): sigmoid(v) = 0.5 * tanh(0.5 v) + 0.5
        #   rows [3*ch,4*ch) (g):      tanh(v)
        row = lax.broadcasted_iota(jnp.int32, (4 * ch, 1), 0)
        scale = jnp.where(row < 3 * ch, 0.5, 1.0)
        shift = jnp.where(row < 3 * ch, 0.5, 0.0)
        gates = jnp.tanh(acc * scale) * scale + shift               # (4*ch, HW)

        gi, gf = gates[0 * ch:1 * ch], gates[1 * ch:2 * ch]
        go, gg = gates[2 * ch:3 * ch], gates[3 * ch:4 * ch]
        c_next = gf * c_refs[l][...] + gi * gg
        h_next = go * jnp.tanh(c_next)
        c_refs[l][...] = c_next
        h_refs[l][...] = h_next
        x = h_next                                   # input to the next layer

    # Lane-dense (4, H*W) prediction frame (relu'd last-layer hidden state).
    preds_ref[0, 0] = jnp.maximum(x, 0.0)


# ----------------------------------------------------------------------------
# ConvLSTMen forward: whole context + autoregressive rollout in one call.
# ----------------------------------------------------------------------------
def convlstm_en_forward(params, satimgs, dem, clims, *, context_length,
                        target_length, kernel_size):
    """satimgs: (B, >=CL, 4, H, W), dem: (B, 1, H, W),
    clims: (B, >=CL+TL-1, 5, H, W).  Returns preds: (B, TL, 4, H, W)."""
    B = satimgs.shape[0]
    H, W = satimgs.shape[3], satimgs.shape[4]
    HW = H * W
    kh, kw = kernel_size
    ph, pw = kh // 2, kw // 2
    n_steps = context_length + target_length - 1

    chs = tuple(int(p['w'].shape[0]) // 4 for p in params)
    cts = tuple(int(p['w'].shape[2]) for p in params)
    ct_pads = tuple(_round_up(ct, 16) for ct in cts)     # bf16 sublane tile
    n_layers = len(params)
    assert chs[-1] == 4, "final ConvLSTM layer must have 4 output channels"
    assert cts[0] - chs[0] == 4 + 1 + 5, "layer 0 expects sat+dem+clim input"
    for l in range(1, n_layers):
        assert cts[l] - chs[l] == chs[l - 1]

    # Channel-major, spatially-flattened (lane-dense) frame streams.
    sat = jnp.transpose(satimgs[:, :context_length], (1, 0, 2, 3, 4))
    sat = sat.reshape(context_length, B, 4, HW).astype(jnp.float32)
    clim = jnp.transpose(clims[:, :n_steps, :5], (1, 0, 2, 3, 4))
    clim = clim.reshape(n_steps, B, 5, HW).astype(jnp.float32)
    dem_f = dem.reshape(B, 1, HW).astype(jnp.float32)

    # Fused im2col weights: (4*ch, kh*kw*ct_pad) bf16; K rows zero-padded so
    # every tap block starts on a 16-sublane (bf16 tile) boundary.
    flat_params = []
    for p, ct, ct_pad in zip(params, cts, ct_pads):
        w = p['w'].astype(jnp.float32)                    # (4*ch, kh*kw, ct)
        w = jnp.pad(w, ((0, 0), (0, 0), (0, ct_pad - ct)))
        flat_params.append(
            w.reshape(w.shape[0], kh * kw * ct_pad).astype(jnp.bfloat16))
        flat_params.append(p['b'].astype(jnp.float32).reshape(-1, 1))

    in_specs = [
        # sat: clamp to the last context frame in the AR phase (no dead DMA).
        pl.BlockSpec((1, 1, 4, HW),
                     lambda b, t: (jnp.minimum(t, context_length - 1), b, 0, 0)),
        pl.BlockSpec((1, 1, 5, HW), lambda b, t: (t, b, 0, 0)),
        # dem: resident per batch element (never re-fetched across steps).
        pl.BlockSpec((1, 1, HW), lambda b, t: (b, 0, 0)),
    ]
    for l in range(n_layers):
        in_specs.append(pl.BlockSpec((4 * chs[l], kh * kw * ct_pads[l]),
                                     lambda b, t: (0, 0)))   # resident weights
        in_specs.append(pl.BlockSpec((4 * chs[l], 1),
                                     lambda b, t: (0, 0)))   # resident bias

    # Only target-phase frames ever hit HBM: all context steps map to block 0,
    # which is flushed once holding the first real prediction (t = CL-1).
    out_spec = pl.BlockSpec(
        (1, 1, 4, HW),
        lambda b, t: (jnp.maximum(t - (context_length - 1), 0), b, 0, 0))
    out_shape = jax.ShapeDtypeStruct((target_length, B, 4, HW), jnp.float32)

    flat_pad = 2 * (ph * W + pw)
    scratch_shapes = []
    for ch, ct_pad in zip(chs, ct_pads):
        scratch_shapes.append(pltpu.VMEM((ch, HW), jnp.float32))    # h state
        scratch_shapes.append(pltpu.VMEM((ch, HW), jnp.float32))    # c state
        scratch_shapes.append(
            pltpu.VMEM((ct_pad, HW + flat_pad), jnp.bfloat16))      # padded [x,h]

    # VMEM budget: persistent scratch + resident params + double-buffered
    # streamed blocks + largest per-layer temporaries, with 2x headroom,
    # capped at 48 MiB (headroom on v7x's 64 MiB physical VMEM).
    scratch_bytes = sum(ch * HW * 4 * 2 + ct_pad * (HW + flat_pad) * 2
                        for ch, ct_pad in zip(chs, ct_pads))
    param_bytes = sum(int(a.size) * a.dtype.itemsize for a in flat_params)
    stream_bytes = 2 * (4 + 5 + 1 + 4) * HW * 4
    temp_bytes = max(kh * kw * ct_pad * HW * 2 + 2 * 4 * ch * HW * 4
                     for ch, ct_pad in zip(chs, ct_pads))
    vmem_limit = min(48 * 1024 * 1024,
                     max(16 * 1024 * 1024,
                         2 * (scratch_bytes + param_bytes + stream_bytes
                              + temp_bytes)))

    flops = 2 * B * n_steps * HW * sum(
        4 * ch * kh * kw * ct_pad for ch, ct_pad in zip(chs, ct_pads))
    transcendentals = 5 * B * n_steps * HW * sum(chs)
    bytes_accessed = (int(sat.size) + int(clim.size) + int(dem_f.size)
                      + target_length * B * 4 * HW) * 4 + param_bytes

    kernel = functools.partial(
        _fused_rollout_kernel, H=H, W=W, kh=kh, kw=kw,
        context_length=context_length, chs=chs, cts=cts, ct_pads=ct_pads)

    out = pl.pallas_call(
        kernel,
        out_shape=out_shape,
        grid=(B, n_steps),
        in_specs=in_specs,
        out_specs=out_spec,
        scratch_shapes=scratch_shapes,
        compiler_params=pltpu.CompilerParams(
            dimension_semantics=("parallel", "arbitrary"),
            vmem_limit_bytes=int(vmem_limit)),
        cost_estimate=pl.CostEstimate(
            flops=int(flops), transcendentals=int(transcendentals),
            bytes_accessed=int(bytes_accessed)),
    )(sat, clim, dem_f, *flat_params)

    preds = out.reshape(target_length, B, 4, H, W)
    return jnp.transpose(preds, (1, 0, 2, 3, 4))      # (B, TL, 4, H, W)


# ----------------------------------------------------------------------------
# Deterministic parameter init. Shapes mirror ConvLSTMCell.conv:
# Conv2d(Cin+Ch, 4*Ch, (kh,kw), padding='same', bias=True), with the weight
# stored tap-major as (4*Ch, kh*kw, Cin+Ch) (PyTorch (4*Ch, Cin+Ch, kh, kw)
# with its last three axes permuted) for the kernel's fused-K matmul form.
# ----------------------------------------------------------------------------
def init_params(key, input_dim, hidden_dims, kernel_size):
    kh, kw = kernel_size
    params = []
    cin = input_dim
    for ch in hidden_dims:
        key, k_w, k_b = jax.random.split(key, 3)
        ct = cin + ch
        fan_in = ct * kh * kw
        w = jax.random.normal(k_w, (4 * ch, kh * kw, ct), jnp.float32) \
            / jnp.sqrt(jnp.float32(fan_in))
        b = 0.01 * jax.random.normal(k_b, (4 * ch,), jnp.float32)
        params.append({'w': w, 'b': b})
        cin = ch
    return params


if __name__ == "__main__":
    key = jax.random.PRNGKey(0)

    # Small, forward-consistent shapes (H*W = 256 keeps everything lane-dense).
    B, H, W = 2, 16, 16
    context_length, target_length = 3, 4
    hidden_dim, num_layers = 32, 1              # hparams: hidden_dim=32, num_layers=1
    hidden_dims = [hidden_dim] * num_layers + [4]   # final 4-channel layer appended
    input_dim = 4 + 1 + 5                       # sat + dem + clim (module defaults)
    kernel_size = (3, 3)

    key, k_sat, k_dem, k_clim, k_par = jax.random.split(key, 5)
    satimgs = jax.random.normal(k_sat, (B, context_length, 4, H, W), jnp.float32)
    dem = jax.random.normal(k_dem, (B, 1, H, W), jnp.float32)
    clims = jax.random.normal(
        k_clim, (B, context_length + target_length, 5, H, W), jnp.float32)

    params = init_params(k_par, input_dim, hidden_dims, kernel_size)

    fwd = jax.jit(functools.partial(
        convlstm_en_forward,
        context_length=context_length,
        target_length=target_length,
        kernel_size=kernel_size))

    preds = fwd(params, satimgs, dem, clims)
    jax.block_until_ready(preds)

    assert preds.shape == (B, target_length, 4, H, W), preds.shape
    assert bool(jnp.all(preds >= 0.0))          # relu'd output frames
    assert bool(jnp.all(jnp.isfinite(preds)))
    print("KERNEL_OK")
</pallas_src>

<mosaic_0001>
module attributes {stable_mosaic.version = 11 : i64} {
  func.func @_fused_rollout_kernel(%arg0: i32, %arg1: i32, %arg2: memref<1x1x4x256xf32, #tpu.memory_space<vmem>>, %arg3: memref<1x1x5x256xf32, #tpu.memory_space<vmem>>, %arg4: memref<1x1x256xf32, #tpu.memory_space<vmem>>, %arg5: memref<128x432xbf16, #tpu.memory_space<vmem>>, %arg6: memref<128x1xf32, #tpu.memory_space<vmem>>, %arg7: memref<16x432xbf16, #tpu.memory_space<vmem>>, %arg8: memref<16x1xf32, #tpu.memory_space<vmem>>, %arg9: memref<1x1x4x256xf32, #tpu.memory_space<vmem>>, %arg10: memref<32x256xf32, #tpu.memory_space<vmem>>, %arg11: memref<32x256xf32, #tpu.memory_space<vmem>>, %arg12: memref<48x290xbf16, #tpu.memory_space<vmem>>, %arg13: memref<4x256xf32, #tpu.memory_space<vmem>>, %arg14: memref<4x256xf32, #tpu.memory_space<vmem>>, %arg15: memref<48x290xbf16, #tpu.memory_space<vmem>>) attributes {dimension_semantics = [#tpu.dimension_semantics<parallel>, #tpu.dimension_semantics<arbitrary>], iteration_bounds = array<i64: 2, 6>, scalar_prefetch = 0 : i64, scratch_operands = 6 : i64, tpu.core_type = #tpu.core_type<tc>, window_params = [{transform_indices = @transform_0, window_bounds = array<i64: 1, 1, 4, 256>}, {transform_indices = @transform_1, window_bounds = array<i64: 1, 1, 5, 256>}, {transform_indices = @transform_2, window_bounds = array<i64: 1, 1, 256>}, {pipeline_mode = #tpu.pipeline_mode<synchronous>, transform_indices = @transform_3, window_bounds = array<i64: 128, 432>}, {pipeline_mode = #tpu.pipeline_mode<synchronous>, transform_indices = @transform_4, window_bounds = array<i64: 128, 1>}, {pipeline_mode = #tpu.pipeline_mode<synchronous>, transform_indices = @transform_5, window_bounds = array<i64: 16, 432>}, {pipeline_mode = #tpu.pipeline_mode<synchronous>, transform_indices = @transform_6, window_bounds = array<i64: 16, 1>}, {transform_indices = @transform_7, window_bounds = array<i64: 1, 1, 4, 256>}]} {
    %c0_i32 = arith.constant 0 : i32
    %0 = arith.cmpi eq, %arg1, %c0_i32 : i32
    %1 = arith.extui %0 : i1 to i32
    %c0_i32_0 = arith.constant 0 : i32
    %2 = arith.cmpi ne, %1, %c0_i32_0 : i32
    scf.if %2 {
      %cst_105 = arith.constant 0.000000e+00 : f32
      %197 = vector.broadcast %cst_105 : f32 to vector<32x256xf32>
      %c0_106 = arith.constant 0 : index
      %c0_107 = arith.constant 0 : index
      %198 = vector.load %arg10[%c0_106, %c0_107] : memref<32x256xf32, #tpu.memory_space<vmem>>, vector<32x256xf32>
      tpu.vector_store %arg10[%c0_106, %c0_107], %197 {strides = array<i32>} : memref<32x256xf32, #tpu.memory_space<vmem>>, vector<32x256xf32>,
      %cst_108 = arith.constant 0.000000e+00 : f32
      %199 = vector.broadcast %cst_108 : f32 to vector<32x256xf32>
      %c0_109 = arith.constant 0 : index
      %c0_110 = arith.constant 0 : index
      %200 = vector.load %arg11[%c0_109, %c0_110] : memref<32x256xf32, #tpu.memory_space<vmem>>, vector<32x256xf32>
      tpu.vector_store %arg11[%c0_109, %c0_110], %199 {strides = array<i32>} : memref<32x256xf32, #tpu.memory_space<vmem>>, vector<32x256xf32>,
      %cst_111 = arith.constant 0.000000e+00 : bf16
      %201 = vector.broadcast %cst_111 : bf16 to vector<48x290xbf16>
      %c0_112 = arith.constant 0 : index
      %c0_113 = arith.constant 0 : index
      %202 = vector.load %arg12[%c0_112, %c0_113] : memref<48x290xbf16, #tpu.memory_space<vmem>>, vector<48x290xbf16>
      tpu.vector_store %arg12[%c0_112, %c0_113], %201 {strides = array<i32>} : memref<48x290xbf16, #tpu.memory_space<vmem>>, vector<48x290xbf16>,
      %cst_114 = arith.constant 0.000000e+00 : f32
      %203 = vector.broadcast %cst_114 : f32 to vector<4x256xf32>
      %c0_115 = arith.constant 0 : index
      %c0_116 = arith.constant 0 : index
      %204 = vector.load %arg13[%c0_115, %c0_116] : memref<4x256xf32, #tpu.memory_space<vmem>>, vector<4x256xf32>
      tpu.vector_store %arg13[%c0_115, %c0_116], %203 {strides = array<i32>} : memref<4x256xf32, #tpu.memory_space<vmem>>, vector<4x256xf32>,
      %cst_117 = arith.constant 0.000000e+00 : f32
      %205 = vector.broadcast %cst_117 : f32 to vector<4x256xf32>
      %c0_118 = arith.constant 0 : index
      %c0_119 = arith.constant 0 : index
      %206 = vector.load %arg14[%c0_118, %c0_119] : memref<4x256xf32, #tpu.memory_space<vmem>>, vector<4x256xf32>
      tpu.vector_store %arg14[%c0_118, %c0_119], %205 {strides = array<i32>} : memref<4x256xf32, #tpu.memory_space<vmem>>, vector<4x256xf32>,
      %cst_120 = arith.constant 0.000000e+00 : bf16
      %207 = vector.broadcast %cst_120 : bf16 to vector<48x290xbf16>
      %c0_121 = arith.constant 0 : index
      %c0_122 = arith.constant 0 : index
      %208 = vector.load %arg15[%c0_121, %c0_122] : memref<48x290xbf16, #tpu.memory_space<vmem>>, vector<48x290xbf16>
      tpu.vector_store %arg15[%c0_121, %c0_122], %207 {strides = array<i32>} : memref<48x290xbf16, #tpu.memory_space<vmem>>, vector<48x290xbf16>,
    } else {
    }
    %3 = tpu.iota {dimensions = array<i32: 1>} : vector<1x256xi32>
    %c16_i32 = arith.constant 16 : i32
    %c0_i32_1 = arith.constant 0 : i32
    %4 = arith.cmpi eq, %c16_i32, %c0_i32_1 : i32
    %c1_i32 = arith.constant 1 : i32
    %5 = arith.select %4, %c1_i32, %c16_i32 : i32
    %6 = vector.broadcast %5 : i32 to vector<1x256xi32>
    %7 = arith.remsi %3, %6 : vector<1x256xi32>
    %c0_i32_2 = arith.constant 0 : i32
    %8 = vector.broadcast %c0_i32_2 : i32 to vector<1x256xi32>
    %9 = arith.cmpi ne, %7, %8 : vector<1x256xi32>
    %c0_i32_3 = arith.constant 0 : i32
    %10 = vector.broadcast %c0_i32_3 : i32 to vector<1x256xi32>
    %11 = arith.cmpi slt, %7, %10 : vector<1x256xi32>
    %c0_i32_4 = arith.constant 0 : i32
    %12 = arith.cmpi slt, %5, %c0_i32_4 : i32
    %13 = vector.broadcast %12 : i1 to vector<1x256xi1>
    %14 = vector.broadcast %13 : vector<1x256xi1> to vector<1x256xi1>
    %15 = arith.xori %11, %14 : vector<1x256xi1>
    %16 = arith.andi %15, %9 : vector<1x256xi1>
    %17 = vector.broadcast %5 : i32 to vector<1x256xi32>
    %18 = arith.addi %7, %17 : vector<1x256xi32>
    %19 = arith.select %16, %18, %7 : vector<1x256xi1>, vector<1x256xi32>
    %c1_i32_5 = arith.constant 1 : i32
    %20 = vector.broadcast %c1_i32_5 : i32 to vector<1x256xi32>
    %21 = arith.cmpi sge, %19, %20 : vector<1x256xi32>
    %c17_i32 = arith.constant 17 : i32
    %22 = vector.broadcast %c17_i32 : i32 to vector<1x256xi32>
    %23 = arith.cmpi slt, %19, %22 : vector<1x256xi32>
    %24 = arith.andi %21, %23 : vector<1x256xi1>
    %c-1_i32 = arith.constant -1 : i32
    %25 = vector.broadcast %c-1_i32 : i32 to vector<1x256xi32>
    %26 = arith.cmpi sge, %19, %25 : vector<1x256xi32>
    %c15_i32 = arith.constant 15 : i32
    %27 = vector.broadcast %c15_i32 : i32 to vector<1x256xi32>
    %28 = arith.cmpi slt, %19, %27 : vector<1x256xi32>
    %29 = arith.andi %26, %28 : vector<1x256xi1>
    %c3_i32 = arith.constant 3 : i32
    %30 = arith.cmpi slt, %arg1, %c3_i32 : i32
    %c0 = arith.constant 0 : index
    %c0_6 = arith.constant 0 : index
    %c0_7 = arith.constant 0 : index
    %c0_8 = arith.constant 0 : index
    %31 = vector.load %arg2[%c0, %c0_6, %c0_7, %c0_8] : memref<1x1x4x256xf32, #tpu.memory_space<vmem>>, vector<1x1x4x256xf32>
    %32 = vector.shape_cast %31 : vector<1x1x4x256xf32> to vector<4x256xf32>
    %c0_9 = arith.constant 0 : index
    %c0_10 = arith.constant 0 : index
    %33 = vector.load %arg13[%c0_9, %c0_10] : memref<4x256xf32, #tpu.memory_space<vmem>>, vector<4x256xf32>
    %cst = arith.constant 0.000000e+00 : f32
    %34 = vector.broadcast %cst : f32 to vector<4x256xf32>
    %35 = arith.maximumf %33, %34 : vector<4x256xf32>
    %36 = arith.select %30, %32, %35 : vector<4x256xf32>
    %c0_11 = arith.constant 0 : index
    %c0_12 = arith.constant 0 : index
    %c0_13 = arith.constant 0 : index
    %37 = vector.load %arg4[%c0_11, %c0_12, %c0_13] : memref<1x1x256xf32, #tpu.memory_space<vmem>>, vector<1x1x256xf32>
    %38 = vector.shape_cast %37 : vector<1x1x256xf32> to vector<1x256xf32>
    %c0_14 = arith.constant 0 : index
    %c0_15 = arith.constant 0 : index
    %c0_16 = arith.constant 0 : index
    %c0_17 = arith.constant 0 : index
    %39 = vector.load %arg3[%c0_14, %c0_15, %c0_16, %c0_17] : memref<1x1x5x256xf32, #tpu.memory_space<vmem>>, vector<1x1x5x256xf32>
    %40 = vector.shape_cast %39 : vector<1x1x5x256xf32> to vector<5x256xf32>
    %41 = tpu.concatenate %36, %38, %40 in 0 : vector<4x256xf32>, vector<1x256xf32>, vector<5x256xf32> -> vector<10x256xf32>
    %42 = arith.truncf %41 : vector<10x256xf32> to vector<10x256xbf16>
    %c0_18 = arith.constant 0 : index
    %c0_19 = arith.constant 0 : index
    %43 = vector.load %arg10[%c0_18, %c0_19] : memref<32x256xf32, #tpu.memory_space<vmem>>, vector<32x256xf32>
    %44 = arith.truncf %43 : vector<32x256xf32> to vector<32x256xbf16>
    %cst_20 = arith.constant 0.000000e+00 : bf16
    %45 = vector.broadcast %cst_20 : bf16 to vector<6x256xbf16>
    %46 = tpu.concatenate %42, %44, %45 in 0 : vector<10x256xbf16>, vector<32x256xbf16>, vector<6x256xbf16> -> vector<48x256xbf16>
    %c0_21 = arith.constant 0 : index
    %c17 = arith.constant 17 : index
    %47 = vector.load %arg12[%c0_21, %c17] : memref<48x290xbf16, #tpu.memory_space<vmem>>, vector<48x256xbf16>
    tpu.vector_store %arg12[%c0_21, %c17], %46 {strides = array<i32>} : memref<48x290xbf16, #tpu.memory_space<vmem>>, vector<48x256xbf16>,
    %c0_22 = arith.constant 0 : index
    %c0_23 = arith.constant 0 : index
    %48 = vector.load %arg12[%c0_22, %c0_23] : memref<48x290xbf16, #tpu.memory_space<vmem>>, vector<48x256xbf16>
    %cst_24 = arith.constant 0.000000e+00 : bf16
    %49 = vector.broadcast %cst_24 : bf16 to vector<48x256xbf16>
    %50 = vector.shape_cast %24 : vector<1x256xi1> to vector<1x256xi1>
    %51 = vector.broadcast %50 : vector<1x256xi1> to vector<48x256xi1>
    %52 = arith.select %51, %48, %49 : vector<48x256xi1>, vector<48x256xbf16>
    %c0_25 = arith.constant 0 : index
    %c1 = arith.constant 1 : index
    %53 = vector.load %arg12[%c0_25, %c1] : memref<48x290xbf16, #tpu.memory_space<vmem>>, vector<48x256xbf16>
    %c0_26 = arith.constant 0 : index
    %c2 = arith.constant 2 : index
    %54 = vector.load %arg12[%c0_26, %c2] : memref<48x290xbf16, #tpu.memory_space<vmem>>, vector<48x256xbf16>
    %cst_27 = arith.constant 0.000000e+00 : bf16
    %55 = vector.broadcast %cst_27 : bf16 to vector<48x256xbf16>
    %56 = vector.shape_cast %29 : vector<1x256xi1> to vector<1x256xi1>
    %57 = vector.broadcast %56 : vector<1x256xi1> to vector<48x256xi1>
    %58 = arith.select %57, %54, %55 : vector<48x256xi1>, vector<48x256xbf16>
    %c0_28 = arith.constant 0 : index
    %c16 = arith.constant 16 : index
    %59 = vector.load %arg12[%c0_28, %c16] : memref<48x290xbf16, #tpu.memory_space<vmem>>, vector<48x256xbf16>
    %cst_29 = arith.constant 0.000000e+00 : bf16
    %60 = vector.broadcast %cst_29 : bf16 to vector<48x256xbf16>
    %61 = vector.shape_cast %24 : vector<1x256xi1> to vector<1x256xi1>
    %62 = vector.broadcast %61 : vector<1x256xi1> to vector<48x256xi1>
    %63 = arith.select %62, %59, %60 : vector<48x256xi1>, vector<48x256xbf16>
    %c0_30 = arith.constant 0 : index
    %c17_31 = arith.constant 17 : index
    %64 = vector.load %arg12[%c0_30, %c17_31] : memref<48x290xbf16, #tpu.memory_space<vmem>>, vector<48x256xbf16>
    %c0_32 = arith.constant 0 : index
    %c18 = arith.constant 18 : index
    %65 = vector.load %arg12[%c0_32, %c18] : memref<48x290xbf16, #tpu.memory_space<vmem>>, vector<48x256xbf16>
    %cst_33 = arith.constant 0.000000e+00 : bf16
    %66 = vector.broadcast %cst_33 : bf16 to vector<48x256xbf16>
    %67 = vector.shape_cast %29 : vector<1x256xi1> to vector<1x256xi1>
    %68 = vector.broadcast %67 : vector<1x256xi1> to vector<48x256xi1>
    %69 = arith.select %68, %65, %66 : vector<48x256xi1>, vector<48x256xbf16>
    %c0_34 = arith.constant 0 : index
    %c32 = arith.constant 32 : index
    %70 = vector.load %arg12[%c0_34, %c32] : memref<48x290xbf16, #tpu.memory_space<vmem>>, vector<48x256xbf16>
    %cst_35 = arith.constant 0.000000e+00 : bf16
    %71 = vector.broadcast %cst_35 : bf16 to vector<48x256xbf16>
    %72 = vector.shape_cast %24 : vector<1x256xi1> to vector<1x256xi1>
    %73 = vector.broadcast %72 : vector<1x256xi1> to vector<48x256xi1>
    %74 = arith.select %73, %70, %71 : vector<48x256xi1>, vector<48x256xbf16>
    %c0_36 = arith.constant 0 : index
    %c33 = arith.constant 33 : index
    %75 = vector.load %arg12[%c0_36, %c33] : memref<48x290xbf16, #tpu.memory_space<vmem>>, vector<48x256xbf16>
    %c0_37 = arith.constant 0 : index
    %c34 = arith.constant 34 : index
    %76 = vector.load %arg12[%c0_37, %c34] : memref<48x290xbf16, #tpu.memory_space<vmem>>, vector<48x256xbf16>
    %cst_38 = arith.constant 0.000000e+00 : bf16
    %77 = vector.broadcast %cst_38 : bf16 to vector<48x256xbf16>
    %78 = vector.shape_cast %29 : vector<1x256xi1> to vector<1x256xi1>
    %79 = vector.broadcast %78 : vector<1x256xi1> to vector<48x256xi1>
    %80 = arith.select %79, %76, %77 : vector<48x256xi1>, vector<48x256xbf16>
    %81 = tpu.concatenate %52, %53, %58, %63, %64, %69, %74, %75, %80 in 0 : vector<48x256xbf16>, vector<48x256xbf16>, vector<48x256xbf16>, vector<48x256xbf16>, vector<48x256xbf16>, vector<48x256xbf16>, vector<48x256xbf16>, vector<48x256xbf16>, vector<48x256xbf16> -> vector<432x256xbf16>
    %c0_39 = arith.constant 0 : index
    %c0_40 = arith.constant 0 : index
    %82 = vector.load %arg5[%c0_39, %c0_40] : memref<128x432xbf16, #tpu.memory_space<vmem>>, vector<128x432xbf16>
    %cst_41 = arith.constant dense<0.000000e+00> : vector<128x256xf32>
    %83 = tpu.matmul %82, %81, %cst_41 {dimension_numbers = #tpu.dot_dimension_numbers<[1], [0], [0], [1], [0, 0, 1, 1], [], []>} : vector<128x432xbf16>, vector<432x256xbf16>, vector<128x256xf32> -> vector<128x256xf32>
    %c0_42 = arith.constant 0 : index
    %c0_43 = arith.constant 0 : index
    %84 = vector.load %arg6[%c0_42, %c0_43] : memref<128x1xf32, #tpu.memory_space<vmem>>, vector<128x1xf32>
    %85 = vector.broadcast %84 : vector<128x1xf32> to vector<128x256xf32>
    %86 = arith.addf %83, %85 : vector<128x256xf32>
    %87 = tpu.iota {dimensions = array<i32: 0>} : vector<128x1xi32>
    %c96_i32 = arith.constant 96 : i32
    %88 = vector.broadcast %c96_i32 : i32 to vector<128x1xi32>
    %89 = arith.cmpi slt, %87, %88 : vector<128x1xi32>
    %cst_44 = arith.constant 5.000000e-01 : f32
    %cst_45 = arith.constant 1.000000e+00 : f32
    %90 = vector.broadcast %cst_44 : f32 to vector<128x1xf32>
    %91 = vector.broadcast %cst_45 : f32 to vector<128x1xf32>
    %92 = arith.select %89, %90, %91 : vector<128x1xi1>, vector<128x1xf32>
    %c96_i32_46 = arith.constant 96 : i32
    %93 = vector.broadcast %c96_i32_46 : i32 to vector<128x1xi32>
    %94 = arith.cmpi slt, %87, %93 : vector<128x1xi32>
    %cst_47 = arith.constant 5.000000e-01 : f32
    %cst_48 = arith.constant 0.000000e+00 : f32
    %95 = vector.broadcast %cst_47 : f32 to vector<128x1xf32>
    %96 = vector.broadcast %cst_48 : f32 to vector<128x1xf32>
    %97 = arith.select %94, %95, %96 : vector<128x1xi1>, vector<128x1xf32>
    %98 = vector.broadcast %92 : vector<128x1xf32> to vector<128x256xf32>
    %99 = arith.mulf %86, %98 : vector<128x256xf32>
    %100 = math.tanh %99 : vector<128x256xf32>
    %101 = vector.broadcast %92 : vector<128x1xf32> to vector<128x256xf32>
    %102 = arith.mulf %100, %101 : vector<128x256xf32>
    %103 = vector.broadcast %97 : vector<128x1xf32> to vector<128x256xf32>
    %104 = arith.addf %102, %103 : vector<128x256xf32>
    %105 = vector.extract_strided_slice %104 {offsets = [0, 0], sizes = [32, 256], strides = [1, 1]} : vector<128x256xf32> to vector<32x256xf32>
    %106 = vector.extract_strided_slice %104 {offsets = [32, 0], sizes = [32, 256], strides = [1, 1]} : vector<128x256xf32> to vector<32x256xf32>
    %107 = vector.extract_strided_slice %104 {offsets = [64, 0], sizes = [32, 256], strides = [1, 1]} : vector<128x256xf32> to vector<32x256xf32>
    %108 = vector.extract_strided_slice %104 {offsets = [96, 0], sizes = [32, 256], strides = [1, 1]} : vector<128x256xf32> to vector<32x256xf32>
    %c0_49 = arith.constant 0 : index
    %c0_50 = arith.constant 0 : index
    %109 = vector.load %arg11[%c0_49, %c0_50] : memref<32x256xf32, #tpu.memory_space<vmem>>, vector<32x256xf32>
    %110 = arith.mulf %106, %109 : vector<32x256xf32>
    %111 = arith.mulf %105, %108 : vector<32x256xf32>
    %112 = arith.addf %110, %111 : vector<32x256xf32>
    %113 = math.tanh %112 : vector<32x256xf32>
    %114 = arith.mulf %107, %113 : vector<32x256xf32>
    %c0_51 = arith.constant 0 : index
    %c0_52 = arith.constant 0 : index
    %115 = vector.load %arg11[%c0_51, %c0_52] : memref<32x256xf32, #tpu.memory_space<vmem>>, vector<32x256xf32>
    tpu.vector_store %arg11[%c0_51, %c0_52], %112 {strides = array<i32>} : memref<32x256xf32, #tpu.memory_space<vmem>>, vector<32x256xf32>,
    %c0_53 = arith.constant 0 : index
    %c0_54 = arith.constant 0 : index
    %116 = vector.load %arg10[%c0_53, %c0_54] : memref<32x256xf32, #tpu.memory_space<vmem>>, vector<32x256xf32>
    tpu.vector_store %arg10[%c0_53, %c0_54], %114 {strides = array<i32>} : memref<32x256xf32, #tpu.memory_space<vmem>>, vector<32x256xf32>,
    %117 = arith.truncf %114 : vector<32x256xf32> to vector<32x256xbf16>
    %c0_55 = arith.constant 0 : index
    %c0_56 = arith.constant 0 : index
    %118 = vector.load %arg13[%c0_55, %c0_56] : memref<4x256xf32, #tpu.memory_space<vmem>>, vector<4x256xf32>
    %119 = arith.truncf %118 : vector<4x256xf32> to vector<4x256xbf16>
    %cst_57 = arith.constant 0.000000e+00 : bf16
    %120 = vector.broadcast %cst_57 : bf16 to vector<12x256xbf16>
    %121 = tpu.concatenate %117, %119, %120 in 0 : vector<32x256xbf16>, vector<4x256xbf16>, vector<12x256xbf16> -> vector<48x256xbf16>
    %c0_58 = arith.constant 0 : index
    %c17_59 = arith.constant 17 : index
    %122 = vector.load %arg15[%c0_58, %c17_59] : memref<48x290xbf16, #tpu.memory_space<vmem>>, vector<48x256xbf16>
    tpu.vector_store %arg15[%c0_58, %c17_59], %121 {strides = array<i32>} : memref<48x290xbf16, #tpu.memory_space<vmem>>, vector<48x256xbf16>,
    %c0_60 = arith.constant 0 : index
    %c0_61 = arith.constant 0 : index
    %123 = vector.load %arg15[%c0_60, %c0_61] : memref<48x290xbf16, #tpu.memory_space<vmem>>, vector<48x256xbf16>
    %cst_62 = arith.constant 0.000000e+00 : bf16
    %124 = vector.broadcast %cst_62 : bf16 to vector<48x256xbf16>
    %125 = vector.shape_cast %24 : vector<1x256xi1> to vector<1x256xi1>
    %126 = vector.broadcast %125 : vector<1x256xi1> to vector<48x256xi1>
    %127 = arith.select %126, %123, %124 : vector<48x256xi1>, vector<48x256xbf16>
    %c0_63 = arith.constant 0 : index
    %c1_64 = arith.constant 1 : index
    %128 = vector.load %arg15[%c0_63, %c1_64] : memref<48x290xbf16, #tpu.memory_space<vmem>>, vector<48x256xbf16>
    %c0_65 = arith.constant 0 : index
    %c2_66 = arith.constant 2 : index
    %129 = vector.load %arg15[%c0_65, %c2_66] : memref<48x290xbf16, #tpu.memory_space<vmem>>, vector<48x256xbf16>
    %cst_67 = arith.constant 0.000000e+00 : bf16
    %130 = vector.broadcast %cst_67 : bf16 to vector<48x256xbf16>
    %131 = vector.shape_cast %29 : vector<1x256xi1> to vector<1x256xi1>
    %132 = vector.broadcast %131 : vector<1x256xi1> to vector<48x256xi1>
    %133 = arith.select %132, %129, %130 : vector<48x256xi1>, vector<48x256xbf16>
    %c0_68 = arith.constant 0 : index
    %c16_69 = arith.constant 16 : index
    %134 = vector.load %arg15[%c0_68, %c16_69] : memref<48x290xbf16, #tpu.memory_space<vmem>>, vector<48x256xbf16>
    %cst_70 = arith.constant 0.000000e+00 : bf16
    %135 = vector.broadcast %cst_70 : bf16 to vector<48x256xbf16>
    %136 = vector.shape_cast %24 : vector<1x256xi1> to vector<1x256xi1>
    %137 = vector.broadcast %136 : vector<1x256xi1> to vector<48x256xi1>
    %138 = arith.select %137, %134, %135 : vector<48x256xi1>, vector<48x256xbf16>
    %c0_71 = arith.constant 0 : index
    %c17_72 = arith.constant 17 : index
    %139 = vector.load %arg15[%c0_71, %c17_72] : memref<48x290xbf16, #tpu.memory_space<vmem>>, vector<48x256xbf16>
    %c0_73 = arith.constant 0 : index
    %c18_74 = arith.constant 18 : index
    %140 = vector.load %arg15[%c0_73, %c18_74] : memref<48x290xbf16, #tpu.memory_space<vmem>>, vector<48x256xbf16>
    %cst_75 = arith.constant 0.000000e+00 : bf16
    %141 = vector.broadcast %cst_75 : bf16 to vector<48x256xbf16>
    %142 = vector.shape_cast %29 : vector<1x256xi1> to vector<1x256xi1>
    %143 = vector.broadcast %142 : vector<1x256xi1> to vector<48x256xi1>
    %144 = arith.select %143, %140, %141 : vector<48x256xi1>, vector<48x256xbf16>
    %c0_76 = arith.constant 0 : index
    %c32_77 = arith.constant 32 : index
    %145 = vector.load %arg15[%c0_76, %c32_77] : memref<48x290xbf16, #tpu.memory_space<vmem>>, vector<48x256xbf16>
    %cst_78 = arith.constant 0.000000e+00 : bf16
    %146 = vector.broadcast %cst_78 : bf16 to vector<48x256xbf16>
    %147 = vector.shape_cast %24 : vector<1x256xi1> to vector<1x256xi1>
    %148 = vector.broadcast %147 : vector<1x256xi1> to vector<48x256xi1>
    %149 = arith.select %148, %145, %146 : vector<48x256xi1>, vector<48x256xbf16>
    %c0_79 = arith.constant 0 : index
    %c33_80 = arith.constant 33 : index
    %150 = vector.load %arg15[%c0_79, %c33_80] : memref<48x290xbf16, #tpu.memory_space<vmem>>, vector<48x256xbf16>
    %c0_81 = arith.constant 0 : index
    %c34_82 = arith.constant 34 : index
    %151 = vector.load %arg15[%c0_81, %c34_82] : memref<48x290xbf16, #tpu.memory_space<vmem>>, vector<48x256xbf16>
    %cst_83 = arith.constant 0.000000e+00 : bf16
    %152 = vector.broadcast %cst_83 : bf16 to vector<48x256xbf16>
    %153 = vector.shape_cast %29 : vector<1x256xi1> to vector<1x256xi1>
    %154 = vector.broadcast %153 : vector<1x256xi1> to vector<48x256xi1>
    %155 = arith.select %154, %151, %152 : vector<48x256xi1>, vector<48x256xbf16>
    %156 = tpu.concatenate %127, %128, %133, %138, %139, %144, %149, %150, %155 in 0 : vector<48x256xbf16>, vector<48x256xbf16>, vector<48x256xbf16>, vector<48x256xbf16>, vector<48x256xbf16>, vector<48x256xbf16>, vector<48x256xbf16>, vector<48x256xbf16>, vector<48x256xbf16> -> vector<432x256xbf16>
    %c0_84 = arith.constant 0 : index
    %c0_85 = arith.constant 0 : index
    %157 = vector.load %arg7[%c0_84, %c0_85] : memref<16x432xbf16, #tpu.memory_space<vmem>>, vector<16x432xbf16>
    %cst_86 = arith.constant dense<0.000000e+00> : vector<16x256xf32>
    %158 = tpu.matmul %157, %156, %cst_86 {dimension_numbers = #tpu.dot_dimension_numbers<[1], [0], [0], [1], [0, 0, 1, 1], [], []>} : vector<16x432xbf16>, vector<432x256xbf16>, vector<16x256xf32> -> vector<16x256xf32>
    %c0_87 = arith.constant 0 : index
    %c0_88 = arith.constant 0 : index
    %159 = vector.load %arg8[%c0_87, %c0_88] : memref<16x1xf32, #tpu.memory_space<vmem>>, vector<16x1xf32>
    %160 = vector.broadcast %159 : vector<16x1xf32> to vector<16x256xf32>
    %161 = arith.addf %158, %160 : vector<16x256xf32>
    %162 = tpu.iota {dimensions = array<i32: 0>} : vector<16x1xi32>
    %c12_i32 = arith.constant 12 : i32
    %163 = vector.broadcast %c12_i32 : i32 to vector<16x1xi32>
    %164 = arith.cmpi slt, %162, %163 : vector<16x1xi32>
    %cst_89 = arith.constant 5.000000e-01 : f32
    %cst_90 = arith.constant 1.000000e+00 : f32
    %165 = vector.broadcast %cst_89 : f32 to vector<16x1xf32>
    %166 = vector.broadcast %cst_90 : f32 to vector<16x1xf32>
    %167 = arith.select %164, %165, %166 : vector<16x1xi1>, vector<16x1xf32>
    %c12_i32_91 = arith.constant 12 : i32
    %168 = vector.broadcast %c12_i32_91 : i32 to vector<16x1xi32>
    %169 = arith.cmpi slt, %162, %168 : vector<16x1xi32>
    %cst_92 = arith.constant 5.000000e-01 : f32
    %cst_93 = arith.constant 0.000000e+00 : f32
    %170 = vector.broadcast %cst_92 : f32 to vector<16x1xf32>
    %171 = vector.broadcast %cst_93 : f32 to vector<16x1xf32>
    %172 = arith.select %169, %170, %171 : vector<16x1xi1>, vector<16x1xf32>
    %173 = vector.broadcast %167 : vector<16x1xf32> to vector<16x256xf32>
    %174 = arith.mulf %161, %173 : vector<16x256xf32>
    %175 = math.tanh %174 : vector<16x256xf32>
    %176 = vector.broadcast %167 : vector<16x1xf32> to vector<16x256xf32>
    %177 = arith.mulf %175, %176 : vector<16x256xf32>
    %178 = vector.broadcast %172 : vector<16x1xf32> to vector<16x256xf32>
    %179 = arith.addf %177, %178 : vector<16x256xf32>
    %180 = vector.extract_strided_slice %179 {offsets = [0, 0], sizes = [4, 256], strides = [1, 1]} : vector<16x256xf32> to vector<4x256xf32>
    %181 = vector.extract_strided_slice %179 {offsets = [4, 0], sizes = [4, 256], strides = [1, 1]} : vector<16x256xf32> to vector<4x256xf32>
    %182 = vector.extract_strided_slice %179 {offsets = [8, 0], sizes = [4, 256], strides = [1, 1]} : vector<16x256xf32> to vector<4x256xf32>
    %183 = vector.extract_strided_slice %179 {offsets = [12, 0], sizes = [4, 256], strides = [1, 1]} : vector<16x256xf32> to vector<4x256xf32>
    %c0_94 = arith.constant 0 : index
    %c0_95 = arith.constant 0 : index
    %184 = vector.load %arg14[%c0_94, %c0_95] : memref<4x256xf32, #tpu.memory_space<vmem>>, vector<4x256xf32>
    %185 = arith.mulf %181, %184 : vector<4x256xf32>
    %186 = arith.mulf %180, %183 : vector<4x256xf32>
    %187 = arith.addf %185, %186 : vector<4x256xf32>
    %188 = math.tanh %187 : vector<4x256xf32>
    %189 = arith.mulf %182, %188 : vector<4x256xf32>
    %c0_96 = arith.constant 0 : index
    %c0_97 = arith.constant 0 : index
    %190 = vector.load %arg14[%c0_96, %c0_97] : memref<4x256xf32, #tpu.memory_space<vmem>>, vector<4x256xf32>
    tpu.vector_store %arg14[%c0_96, %c0_97], %187 {strides = array<i32>} : memref<4x256xf32, #tpu.memory_space<vmem>>, vector<4x256xf32>,
    %c0_98 = arith.constant 0 : index
    %c0_99 = arith.constant 0 : index
    %191 = vector.load %arg13[%c0_98, %c0_99] : memref<4x256xf32, #tpu.memory_space<vmem>>, vector<4x256xf32>
    tpu.vector_store %arg13[%c0_98, %c0_99], %189 {strides = array<i32>} : memref<4x256xf32, #tpu.memory_space<vmem>>, vector<4x256xf32>,
    %cst_100 = arith.constant 0.000000e+00 : f32
    %192 = vector.broadcast %cst_100 : f32 to vector<4x256xf32>
    %193 = arith.maximumf %189, %192 : vector<4x256xf32>
    %c0_101 = arith.constant 0 : index
    %c0_102 = arith.constant 0 : index
    %c0_103 = arith.constant 0 : index
    %c0_104 = arith.constant 0 : index
    %194 = vector.load %arg9[%c0_101, %c0_102, %c0_103, %c0_104] : memref<1x1x4x256xf32, #tpu.memory_space<vmem>>, vector<1x1x4x256xf32>
    %195 = vector.shape_cast %194 : vector<1x1x4x256xf32> to vector<4x256xf32>
    %196 = vector.shape_cast %193 : vector<4x256xf32> to vector<1x1x4x256xf32>
    tpu.vector_store %arg9[%c0_101, %c0_102, %c0_103, %c0_104], %196 {strides = array<i32>} : memref<1x1x4x256xf32, #tpu.memory_space<vmem>>, vector<1x1x4x256xf32>,
    return
  }
  func.func @transform_0(%arg0: i32, %arg1: i32) -> (i32, i32, i32, i32) {
    %c2_i32 = arith.constant 2 : i32
    %0 = arith.minsi %arg1, %c2_i32 : i32
    %c0_i32 = arith.constant 0 : i32
    %c0_i32_0 = arith.constant 0 : i32
    %c0_i32_1 = arith.constant 0 : i32
    return %0, %arg0, %c0_i32, %c0_i32_0 : i32, i32, i32, i32
  }
  func.func @transform_1(%arg0: i32, %arg1: i32) -> (i32, i32, i32, i32) {
    %c0_i32 = arith.constant 0 : i32
    %c0_i32_0 = arith.constant 0 : i32
    %c0_i32_1 = arith.constant 0 : i32
    return %arg1, %arg0, %c0_i32, %c0_i32_0 : i32, i32, i32, i32
  }
  func.func @transform_2(%arg0: i32, %arg1: i32) -> (i32, i32, i32) {
    %c0_i32 = arith.constant 0 : i32
    %c0_i32_0 = arith.constant 0 : i32
    %c0_i32_1 = arith.constant 0 : i32
    return %arg0, %c0_i32, %c0_i32_0 : i32, i32, i32
  }
  func.func @transform_3(%arg0: i32, %arg1: i32) -> (i32, i32) {
    %c0_i32 = arith.constant 0 : i32
    %c0_i32_0 = arith.constant 0 : i32
    %c0_i32_1 = arith.constant 0 : i32
    return %c0_i32, %c0_i32_0 : i32, i32
  }
  func.func @transform_4(%arg0: i32, %arg1: i32) -> (i32, i32) {
    %c0_i32 = arith.constant 0 : i32
    %c0_i32_0 = arith.constant 0 : i32
    %c0_i32_1 = arith.constant 0 : i32
    return %c0_i32, %c0_i32_0 : i32, i32
  }
  func.func @transform_5(%arg0: i32, %arg1: i32) -> (i32, i32) {
    %c0_i32 = arith.constant 0 : i32
    %c0_i32_0 = arith.constant 0 : i32
    %c0_i32_1 = arith.constant 0 : i32
    return %c0_i32, %c0_i32_0 : i32, i32
  }
  func.func @transform_6(%arg0: i32, %arg1: i32) -> (i32, i32) {
    %c0_i32 = arith.constant 0 : i32
    %c0_i32_0 = arith.constant 0 : i32
    %c0_i32_1 = arith.constant 0 : i32
    return %c0_i32, %c0_i32_0 : i32, i32
  }
  func.func @transform_7(%arg0: i32, %arg1: i32) -> (i32, i32, i32, i32) {
    %c2_i32 = arith.constant 2 : i32
    %0 = arith.subi %arg1, %c2_i32 : i32
    %c0_i32 = arith.constant 0 : i32
    %1 = arith.maxsi %0, %c0_i32 : i32
    %c0_i32_0 = arith.constant 0 : i32
    %c0_i32_1 = arith.constant 0 : i32
    %c0_i32_2 = arith.constant 0 : i32
    return %1, %arg0, %c0_i32_0, %c0_i32_1 : i32, i32, i32, i32
  }
}

</mosaic_0001>

<llo_original>
// kernel: convlstm_en_forward.1
$region0: #{convlstm_en_forward.1}
  #allocation0 [shape = 'u32[]', space=smem, size = 0x4, offset = 0x4, fixed_abs, tag = 'smem constant byte address 0x4 - core index']
  #allocation1 [shape = 'u32[144,128]{1,0:T(1,128)}', space=vmem, size = 0x12000, scoped, tag = 'internal scratch']
  #allocation2 [shape = 'f32[32,256]{1,0:T(8,128)}', space=vmem, size = 0x8000, scoped, tag = 'scratch operand']
  #allocation3 [shape = 'f32[32,256]{1,0:T(8,128)}', space=vmem, size = 0x8000, scoped, tag = 'scratch operand']
  #allocation4 [shape = 'bf16[48,290]{1,0:T(16,128)(2,1)}', space=vmem, size = 0x9000, scoped, tag = 'scratch operand']
  #allocation5 [shape = 'f32[4,256]{1,0:T(4,128)}', space=vmem, size = 0x1000, scoped, tag = 'scratch operand']
  #allocation6 [shape = 'f32[4,256]{1,0:T(4,128)}', space=vmem, size = 0x1000, scoped, tag = 'scratch operand']
  #allocation7 [shape = 'bf16[48,290]{1,0:T(16,128)(2,1)}', space=vmem, size = 0x9000, scoped, tag = 'scratch operand']
  %s0 = inlined_call_operand.vmem [shape: f32[3,2,4,256], index: 0, kind: input, shape index: {}]
  %s1 = inlined_call_operand.vmem [shape: f32[6,2,5,256], index: 1, kind: input, shape index: {}]
  %s2 = inlined_call_operand.vmem [shape: f32[2,1,256], index: 2, kind: input, shape index: {}]
  %s3 = inlined_call_operand.vmem [shape: bf16[128,432], index: 3, kind: input, shape index: {}]
  %s4 = inlined_call_operand.vmem [shape: f32[128,1], index: 4, kind: input, shape index: {}]
  %s5 = inlined_call_operand.vmem [shape: bf16[16,432], index: 5, kind: input, shape index: {}]
  %s6 = inlined_call_operand.vmem [shape: f32[16,1], index: 6, kind: input, shape index: {}]
  %s7 = inlined_call_operand.vmem [shape: f32[4,2,4,256], index: 7, kind: output, shape index: {}]
  %s8 = sld [smem:[#allocation0]]
  $region65: #{convlstm_en_forward.1} parent=0
    _
  %s10 = ssub.s32 1, %s8
  %s11 = scalar_select 0, %s10, %s8
  loop: start=0, step=1, limit=14
  $region2: #{convlstm_en_forward.1} parent=0 // loop_pre_header
    _
  $region3: #{convlstm_en_forward.1} parent=0 // loop_header
    %s13 = sphi 0, %s17
    %p14 = scmp.ge.s32.totalorder %s13, 14
    %s20 = sphi 0, %s32
    %s21 = sphi 0, %s28
    %s22 = sphi 0, %s20
    %s23 = sphi 0, %s21
    %s24 = sphi 0, %s22
    %s25 = sphi 0, %s23
    %s41 = sphi 0, %s43
    %s44 = sphi 0, %s41
    %s45 = sphi 0, %s44
    %s61 = sphi 0, %s45
    %s69 = sphi 0, %s71
    %s72 = sphi 0, %s69
    %s73 = sphi 0, %s72
    %s89 = sphi 0, %s73
    %s95 = sphi 0, %s97
    %s98 = sphi 0, %s95
    %s99 = sphi 0, %s98
    %s115 = sphi 0, %s99
    %s119 = sphi 0, %s119
    %s121 = sphi 0, %s119
    %s122 = sphi 0, %s121
    %s136 = sphi 0, %s122
    %s140 = sphi 0, %s140
    %s142 = sphi 0, %s140
    %s143 = sphi 0, %s142
    %s157 = sphi 0, %s143
    %s161 = sphi 0, %s161
    %s163 = sphi 0, %s161
    %s164 = sphi 0, %s163
    %s178 = sphi 0, %s164
    %s182 = sphi 0, %s182
    %s184 = sphi 0, %s182
    %s185 = sphi 0, %s184
    %s199 = sphi 0, %s185
    %s213 = sphi 0, %s215
    %s216 = sphi 0, %s213
    %s217 = sphi 0, %s216
    %s233 = sphi 0, %s217
  $region4: #{convlstm_en_forward.1} parent=0 // loop_header_branch
    %16 = sbr.rel (%p14) target = $region8
  $region5: #{convlstm_en_forward.1} parent=0 // loop_body
    %s18 = ssub.s32 %s13, 1
    %s19 = ssub.s32 %s13, 2
    %s26 = sadd.s32 1, %s21
    %p27 = scmp.ge.s32.totalorder %s26, 6
    %s28 = scalar_select %p27, 0, %s26
    %s29 = sadd.s32 1, %s20
    %s30 = scalar_select %p27, %s29, %s20
    %p31 = scmp.ge.s32.totalorder %s30, 2
    %s32 = scalar_select %p31, 0, %s30
    %p33 = scmp.lt.s32.totalorder %s21, 2
    %s34 = scalar_select %p33, %s21, 2
    %p35 = scmp.lt.s32.totalorder %s28, 2
    %s36 = scalar_select %p35, %s28, 2
    %s37 = ssub.s32 %s34, %s36
    %s38 = ssub.s32 %s20, %s32
    %s39 = sor.u32 %s37, %s38
    %p40 = scmp.eq.s32.totalorder %s39, 0
    %s42 = sadd.s32 %s41, 1
    %s43 = scalar_select %p40, %s41, %s42
    %p46 = pneg %p40
    %p47 = scmp.eq.s32.totalorder %s13, 11
    %p48 = por %p46, %p47
    %p49 = scmp.ne.s32.totalorder %s41, %s44
    %p50 = scmp.eq.s32.totalorder %s13, 0
    %p51 = por %p49, %p50
    %p52 = scmp.ne.s32.totalorder %s41, %s44
    %p53 = scmp.eq.s32.totalorder %s18, 11
    %p54 = por %p52, %p53
    %p55 = scmp.ne.s32.totalorder %s44, %s45
    %p56 = scmp.eq.s32.totalorder %s18, 0
    %p57 = por %p55, %p56
    %p58 = scmp.ne.s32.totalorder %s44, %s45
    %p59 = scmp.eq.s32.totalorder %s19, 11
    %p60 = por %p58, %p59
    %p62 = scmp.ne.s32.totalorder %s45, %s61
    %p63 = scmp.eq.s32.totalorder %s19, 0
    %p64 = por %p62, %p63
    %s65 = ssub.s32 %s21, %s28
    %s66 = ssub.s32 %s20, %s32
    %s67 = sor.u32 %s65, %s66
    %p68 = scmp.eq.s32.totalorder %s67, 0
    %s70 = sadd.s32 %s69, 1
    %s71 = scalar_select %p68, %s69, %s70
    %p74 = pneg %p68
    %p75 = scmp.eq.s32.totalorder %s13, 11
    %p76 = por %p74, %p75
    %p77 = scmp.ne.s32.totalorder %s69, %s72
    %p78 = scmp.eq.s32.totalorder %s13, 0
    %p79 = por %p77, %p78
    %p80 = scmp.ne.s32.totalorder %s69, %s72
    %p81 = scmp.eq.s32.totalorder %s18, 11
    %p82 = por %p80, %p81
    %p83 = scmp.ne.s32.totalorder %s72, %s73
    %p84 = scmp.eq.s32.totalorder %s18, 0
    %p85 = por %p83, %p84
    %p86 = scmp.ne.s32.totalorder %s72, %s73
    %p87 = scmp.eq.s32.totalorder %s19, 11
    %p88 = por %p86, %p87
    %p90 = scmp.ne.s32.totalorder %s73, %s89
    %p91 = scmp.eq.s32.totalorder %s19, 0
    %p92 = por %p90, %p91
    %s93 = ssub.s32 %s20, %s32
    %p94 = scmp.eq.s32.totalorder %s93, 0
    %s96 = sadd.s32 %s95, 1
    %s97 = scalar_select %p94, %s95, %s96
    %p100 = pneg %p94
    %p101 = scmp.eq.s32.totalorder %s13, 11
    %p102 = por %p100, %p101
    %p103 = scmp.ne.s32.totalorder %s95, %s98
    %p104 = scmp.eq.s32.totalorder %s13, 0
    %p105 = por %p103, %p104
    %p106 = scmp.ne.s32.totalorder %s95, %s98
    %p107 = scmp.eq.s32.totalorder %s18, 11
    %p108 = por %p106, %p107
    %p109 = scmp.ne.s32.totalorder %s98, %s99
    %p110 = scmp.eq.s32.totalorder %s18, 0
    %p111 = por %p109, %p110
    %p112 = scmp.ne.s32.totalorder %s98, %s99
    %p113 = scmp.eq.s32.totalorder %s19, 11
    %p114 = por %p112, %p113
    %p116 = scmp.ne.s32.totalorder %s99, %s115
    %p117 = scmp.eq.s32.totalorder %s19, 0
    %p118 = por %p116, %p117
    %s120 = sadd.s32 %s119, 1
    %p123 = scmp.eq.s32.totalorder %s13, 11
    %p124 = scmp.ne.s32.totalorder %s119, %s121
    %p125 = scmp.eq.s32.totalorder %s13, 0
    %p126 = por %p124, %p125
    %p127 = scmp.ne.s32.totalorder %s119, %s121
    %p128 = scmp.eq.s32.totalorder %s18, 11
    %p129 = por %p127, %p128
    %p130 = scmp.ne.s32.totalorder %s121, %s122
    %p131 = scmp.eq.s32.totalorder %s18, 0
    %p132 = por %p130, %p131
    %p133 = scmp.ne.s32.totalorder %s121, %s122
    %p134 = scmp.eq.s32.totalorder %s19, 11
    %p135 = por %p133, %p134
    %p137 = scmp.ne.s32.totalorder %s122, %s136
    %p138 = scmp.eq.s32.totalorder %s19, 0
    %p139 = por %p137, %p138
    %s141 = sadd.s32 %s140, 1
    %p144 = scmp.eq.s32.totalorder %s13, 11
    %p145 = scmp.ne.s32.totalorder %s140, %s142
    %p146 = scmp.eq.s32.totalorder %s13, 0
    %p147 = por %p145, %p146
    %p148 = scmp.ne.s32.totalorder %s140, %s142
    %p149 = scmp.eq.s32.totalorder %s18, 11
    %p150 = por %p148, %p149
    %p151 = scmp.ne.s32.totalorder %s142, %s143
    %p152 = scmp.eq.s32.totalorder %s18, 0
    %p153 = por %p151, %p152
    %p154 = scmp.ne.s32.totalorder %s142, %s143
    %p155 = scmp.eq.s32.totalorder %s19, 11
    %p156 = por %p154, %p155
    %p158 = scmp.ne.s32.totalorder %s143, %s157
    %p159 = scmp.eq.s32.totalorder %s19, 0
    %p160 = por %p158, %p159
    %s162 = sadd.s32 %s161, 1
    %p165 = scmp.eq.s32.totalorder %s13, 11
    %p166 = scmp.ne.s32.totalorder %s161, %s163
    %p167 = scmp.eq.s32.totalorder %s13, 0
    %p168 = por %p166, %p167
    %p169 = scmp.ne.s32.totalorder %s161, %s163
    %p170 = scmp.eq.s32.totalorder %s18, 11
    %p171 = por %p169, %p170
    %p172 = scmp.ne.s32.totalorder %s163, %s164
    %p173 = scmp.eq.s32.totalorder %s18, 0
    %p174 = por %p172, %p173
    %p175 = scmp.ne.s32.totalorder %s163, %s164
    %p176 = scmp.eq.s32.totalorder %s19, 11
    %p177 = por %p175, %p176
    %p179 = scmp.ne.s32.totalorder %s164, %s178
    %p180 = scmp.eq.s32.totalorder %s19, 0
    %p181 = por %p179, %p180
    %s183 = sadd.s32 %s182, 1
    %p186 = scmp.eq.s32.totalorder %s13, 11
    %p187 = scmp.ne.s32.totalorder %s182, %s184
    %p188 = scmp.eq.s32.totalorder %s13, 0
    %p189 = por %p187, %p188
    %p190 = scmp.ne.s32.totalorder %s182, %s184
    %p191 = scmp.eq.s32.totalorder %s18, 11
    %p192 = por %p190, %p191
    %p193 = scmp.ne.s32.totalorder %s184, %s185
    %p194 = scmp.eq.s32.totalorder %s18, 0
    %p195 = por %p193, %p194
    %p196 = scmp.ne.s32.totalorder %s184, %s185
    %p197 = scmp.eq.s32.totalorder %s19, 11
    %p198 = por %p196, %p197
    %p200 = scmp.ne.s32.totalorder %s185, %s199
    %p201 = scmp.eq.s32.totalorder %s19, 0
    %p202 = por %p200, %p201
    %s203 = ssub.s32 %s21, 2
    %p204 = scmp.gt.s32.totalorder %s203, 0
    %s205 = scalar_select %p204, %s203, 0
    %s206 = ssub.s32 %s28, 2
    %p207 = scmp.gt.s32.totalorder %s206, 0
    %s208 = scalar_select %p207, %s206, 0
    %s209 = ssub.s32 %s205, %s208
    %s210 = ssub.s32 %s20, %s32
    %s211 = sor.u32 %s209, %s210
    %p212 = scmp.eq.s32.totalorder %s211, 0
    %s214 = sadd.s32 %s213, 1
    %s215 = scalar_select %p212, %s213, %s214
    %p218 = pneg %p212
    %p219 = scmp.eq.s32.totalorder %s13, 11
    %p220 = por %p218, %p219
    %p221 = scmp.ne.s32.totalorder %s213, %s216
    %p222 = scmp.eq.s32.totalorder %s13, 0
    %p223 = por %p221, %p222
    %p224 = scmp.ne.s32.totalorder %s213, %s216
    %p225 = scmp.eq.s32.totalorder %s18, 11
    %p226 = por %p224, %p225
    %p227 = scmp.ne.s32.totalorder %s216, %s217
    %p228 = scmp.eq.s32.totalorder %s18, 0
    %p229 = por %p227, %p228
    %p230 = scmp.ne.s32.totalorder %s216, %s217
    %p231 = scmp.eq.s32.totalorder %s19, 11
    %p232 = por %p230, %p231
    %p234 = scmp.ne.s32.totalorder %s217, %s233
    %p235 = scmp.eq.s32.totalorder %s19, 0
    %p236 = por %p234, %p235
    %p237 = scmp.le.s32.totalorder 1, %s13
    %p238 = scmp.lt.s32.totalorder %s13, 13
    %p239 = pnand %p237, %p238
    %p240 = pneg %p239
    // Predicated region
    $region9: #{convlstm_en_forward.1} parent=5 // pred_check
      _
    $region10: #{convlstm_en_forward.1} parent=5 // pred_check_branch
      %242 = sbr.rel (%p239) target = $region12
    $region11: #{convlstm_en_forward.1} parent=5 // pred_region
      %s243 = ssub.s32 %s13, 1
      // Predicated region
      $region13: #{convlstm_en_forward.1} parent=11 // pred_check
        %p244 = pneg %p132
      $region14: #{convlstm_en_forward.1} parent=11 // pred_check_branch
        %246 = sbr.rel (%p244) target = $region16
      $region15: #{convlstm_en_forward.1} parent=11 // pred_region
        _
      $region16: #{convlstm_en_forward.1} parent=11 // pred_fallthru
        _
      // Predicated region
      $region17: #{convlstm_en_forward.1} parent=11 // pred_check
        %p247 = pneg %p153
      $region18: #{convlstm_en_forward.1} parent=11 // pred_check_branch
        %249 = sbr.rel (%p247) target = $region20
      $region19: #{convlstm_en_forward.1} parent=11 // pred_region
        _
      $region20: #{convlstm_en_forward.1} parent=11 // pred_fallthru
        _
      // Predicated region
      $region21: #{convlstm_en_forward.1} parent=11 // pred_check
        %p250 = pneg %p174
      $region22: #{convlstm_en_forward.1} parent=11 // pred_check_branch
        %252 = sbr.rel (%p250) target = $region24
      $region23: #{convlstm_en_forward.1} parent=11 // pred_region
        _
      $region24: #{convlstm_en_forward.1} parent=11 // pred_fallthru
        _
      // Predicated region
      $region25: #{convlstm_en_forward.1} parent=11 // pred_check
        %p253 = pneg %p195
      $region26: #{convlstm_en_forward.1} parent=11 // pred_check_branch
        %255 = sbr.rel (%p253) target = $region28
      $region27: #{convlstm_en_forward.1} parent=11 // pred_region
        _
      $region28: #{convlstm_en_forward.1} parent=11 // pred_fallthru
        _
    $region12: #{convlstm_en_forward.1} parent=5 // pred_fallthru
      _
    %p256 = scmp.lt.s32.totalorder %s13, 12
    // Predicated region
    $region29: #{convlstm_en_forward.1} parent=5 // pred_check
      %p257 = pneg %p256
    $region30: #{convlstm_en_forward.1} parent=5 // pred_check_branch
      %259 = sbr.rel (%p257) target = $region32
    $region31: #{convlstm_en_forward.1} parent=5 // pred_region
      // Predicated region
      $region33: #{convlstm_en_forward.1} parent=31 // pred_check
        %p260 = pneg %p51
      $region34: #{convlstm_en_forward.1} parent=31 // pred_check_branch
        %262 = sbr.rel (%p260) target = $region36
      $region35: #{convlstm_en_forward.1} parent=31 // pred_region
        %p263 = scmp.lt.s32.totalorder %s21, 2
        %s264 = scalar_select %p263, %s21, 2
        %p265 = scmp.lt.s32.totalorder %s264, 2
        %s266 = scalar_select %p265, %s264, 2
        %p267 = scmp.lt.s32.totalorder %s20, 1
        %s268 = scalar_select %p267, %s20, 1
        %s269 = smul.addr %s268, 2
        %s270 = smul.addr %s266, 4
        %s271 = sadd.s32 %s269, %s270
        %s272 = smul.addr %s271, 4
        %s273 = scalar_lea.vmem %s0, %s272
        %p274 = scmp.lt.s32.totalorder %s21, 2
        %s275 = scalar_select %p274, %s21, 2
      $region36: #{convlstm_en_forward.1} parent=31 // pred_fallthru
        _
      // Predicated region
      $region37: #{convlstm_en_forward.1} parent=31 // pred_check
        %p276 = pneg %p79
      $region38: #{convlstm_en_forward.1} parent=31 // pred_check_branch
        %278 = sbr.rel (%p276) target = $region40
      $region39: #{convlstm_en_forward.1} parent=31 // pred_region
        %p279 = scmp.lt.s32.totalorder %s21, 5
        %s280 = scalar_select %p279, %s21, 5
        %p281 = scmp.lt.s32.totalorder %s20, 1
        %s282 = scalar_select %p281, %s20, 1
        %s283 = smul.addr %s282, 2
        %s284 = smul.addr %s280, 4
        %s285 = sadd.s32 %s283, %s284
        %s286 = smul.addr %s285, 8
        %s287 = scalar_lea.vmem %s1, %s286
      $region40: #{convlstm_en_forward.1} parent=31 // pred_fallthru
        _
      // Predicated region
      $region41: #{convlstm_en_forward.1} parent=31 // pred_check
        %p288 = pneg %p105
      $region42: #{convlstm_en_forward.1} parent=31 // pred_check_branch
        %290 = sbr.rel (%p288) target = $region44
      $region43: #{convlstm_en_forward.1} parent=31 // pred_region
        %p291 = scmp.lt.s32.totalorder %s20, 1
        %s292 = scalar_select %p291, %s20, 1
        %s293 = smul.addr %s292, 2
        %s294 = scalar_lea.vmem %s2, %s293
      $region44: #{convlstm_en_forward.1} parent=31 // pred_fallthru
        _
    $region32: #{convlstm_en_forward.1} parent=5 // pred_fallthru
      _
    %p295 = scmp.le.s32.totalorder 1, %s13
    %p296 = scmp.lt.s32.totalorder %s13, 13
    %p297 = pnand %p295, %p296
    %p298 = pneg %p297
    // Predicated region
    $region45: #{convlstm_en_forward.1} parent=5 // pred_check
      _
    $region46: #{convlstm_en_forward.1} parent=5 // pred_check_branch
      %300 = sbr.rel (%p297) target = $region48
    $region47: #{convlstm_en_forward.1} parent=5 // pred_region
      %s301 = ssub.s32 %s13, 1
      %p302 = scmp.lt.s32.totalorder %s23, 2
      %s303 = scalar_select %p302, %s23, 2
      %p304 = scmp.lt.s32.totalorder %s303, 2
      %s305 = scalar_select %p304, %s303, 2
      %p306 = scmp.lt.s32.totalorder %s22, 1
      %s307 = scalar_select %p306, %s22, 1
      %s308 = smul.addr %s307, 2
      %s309 = smul.addr %s305, 4
      %s310 = sadd.s32 %s308, %s309
      %s311 = smul.addr %s310, 4
      %s312 = scalar_lea.vmem %s0, %s311
      %p313 = pneg %p57
      %p314 = pneg %p54
      %p315 = scmp.lt.s32.totalorder %s23, 5
      %s316 = scalar_select %p315, %s23, 5
      %p317 = scmp.lt.s32.totalorder %s22, 1
      %s318 = scalar_select %p317, %s22, 1
      %s319 = smul.addr %s318, 2
      %s320 = smul.addr %s316, 4
      %s321 = sadd.s32 %s319, %s320
      %s322 = smul.addr %s321, 8
      %s323 = scalar_lea.vmem %s1, %s322
      %p324 = pneg %p85
      %p325 = pneg %p82
      %p326 = scmp.lt.s32.totalorder %s22, 1
      %s327 = scalar_select %p326, %s22, 1
      %s328 = smul.addr %s327, 2
      %s329 = scalar_lea.vmem %s2, %s328
      %p330 = pneg %p111
      %p331 = pneg %p108
      %p332 = pneg %p132
      %p333 = pneg %p129
      %p334 = pneg %p153
      %p335 = pneg %p150
      %p336 = pneg %p174
      %p337 = pneg %p171
      %p338 = pneg %p195
      %p339 = pneg %p192
      %p340 = pneg %p229
      %p341 = pneg %p226
      %s342 = ssub.s32 %s23, 2
      %p343 = scmp.gt.s32.totalorder %s342, 0
      %s344 = scalar_select %p343, %s342, 0
      %p345 = scmp.lt.s32.totalorder %s344, 3
      %s346 = scalar_select %p345, %s344, 3
      %p347 = scmp.lt.s32.totalorder %s22, 1
      %s348 = scalar_select %p347, %s22, 1
      %s349 = smul.addr %s348, 2
      %s350 = smul.addr %s346, 4
      %s351 = sadd.s32 %s349, %s350
      %s352 = smul.addr %s351, 4
      %s353 = scalar_lea.vmem %s7, %s352
      %p354 = scmp.lt.s32.totalorder %s23, 2
      %s355 = scalar_select %p354, %s23, 2
      %p356 = scmp.lt.s32.totalorder %s355, 2
      %s357 = scalar_select %p356, %s355, 2
      %p358 = scmp.lt.s32.totalorder %s22, 1
      %s359 = scalar_select %p358, %s22, 1
      %s360 = smul.addr %s359, 2
      %s361 = smul.addr %s357, 4
      %s362 = sadd.s32 %s360, %s361
      %s363 = smul.addr %s362, 4
      %s364 = scalar_lea.vmem %s0, %s363
      %p365 = scmp.lt.s32.totalorder %s23, 2
      %s366 = scalar_select %p365, %s23, 2
      %p367 = scmp.lt.s32.totalorder %s23, 5
      %s368 = scalar_select %p367, %s23, 5
      %p369 = scmp.lt.s32.totalorder %s22, 1
      %s370 = scalar_select %p369, %s22, 1
      %s371 = smul.addr %s370, 2
      %s372 = smul.addr %s368, 4
      %s373 = sadd.s32 %s371, %s372
      %s374 = smul.addr %s373, 8
      %s375 = scalar_lea.vmem %s1, %s374
      %p376 = scmp.lt.s32.totalorder %s22, 1
      %s377 = scalar_select %p376, %s22, 1
      %s378 = smul.addr %s377, 2
      %s379 = scalar_lea.vmem %s2, %s378
      %s380 = ssub.s32 %s23, 2
      %p381 = scmp.gt.s32.totalorder %s380, 0
      %s382 = scalar_select %p381, %s380, 0
      %p383 = scmp.lt.s32.totalorder %s382, 3
      %s384 = scalar_select %p383, %s382, 3
      %p385 = scmp.lt.s32.totalorder %s22, 1
      %s386 = scalar_select %p385, %s22, 1
      %s387 = smul.addr %s386, 2
      %s388 = smul.addr %s384, 4
      %s389 = sadd.s32 %s387, %s388
      %s390 = smul.addr %s389, 4
      %s391 = scalar_lea.vmem %s7, %s390
      %s392 = ssub.s32 %s23, 2
      %p393 = scmp.gt.s32.totalorder %s392, 0
      %s394 = scalar_select %p393, %s392, 0
      %p398 = scmp.eq.s32.totalorder %s23, 0
      // Predicated region
      $region49: #{convlstm_en_forward.1} parent=47 // pred_check
        %p399 = pneg %p398
      $region50: #{convlstm_en_forward.1} parent=47 // pred_check_branch
        %401 = sbr.rel (%p399) target = $region52
      $region51: #{convlstm_en_forward.1} parent=47 // pred_region
        %402 = vst [vmem:[#allocation2] sm:$0xff] 0.0
        %403 = vst [vmem:[#allocation2 + $0x8] sm:$0xff] 0.0
        %404 = vst [vmem:[#allocation2 + $0x10] sm:$0xff] 0.0
        %405 = vst [vmem:[#allocation2 + $0x18] sm:$0xff] 0.0
        %406 = vst [vmem:[#allocation2 + $0x20] sm:$0xff] 0.0
        %407 = vst [vmem:[#allocation2 + $0x28] sm:$0xff] 0.0
        %408 = vst [vmem:[#allocation2 + $0x30] sm:$0xff] 0.0
        %409 = vst [vmem:[#allocation2 + $0x38] sm:$0xff] 0.0
        %410 = vst [vmem:[#allocation3] sm:$0xff] 0.0
        %411 = vst [vmem:[#allocation3 + $0x8] sm:$0xff] 0.0
        %412 = vst [vmem:[#allocation3 + $0x10] sm:$0xff] 0.0
        %413 = vst [vmem:[#allocation3 + $0x18] sm:$0xff] 0.0
        %414 = vst [vmem:[#allocation3 + $0x20] sm:$0xff] 0.0
        %415 = vst [vmem:[#allocation3 + $0x28] sm:$0xff] 0.0
        %416 = vst [vmem:[#allocation3 + $0x30] sm:$0xff] 0.0
        %417 = vst [vmem:[#allocation3 + $0x38] sm:$0xff] 0.0
        %418 = vst [vmem:[#allocation4] sm:$0xff] 0
        %419 = vst [vmem:[#allocation4 + $0x8] sm:$0xff] 0
        %vm420 = vcmask 277504
        %421 = vst.msk [vmem:[#allocation4 + $0x10] sm:$0xff] %vm420, 0
        %422 = vst [vmem:[#allocation4 + $0x18] sm:$0xff] 0
        %423 = vst [vmem:[#allocation4 + $0x20] sm:$0xff] 0
        %424 = vst.msk [vmem:[#allocation4 + $0x28] sm:$0xff] %vm420, 0
        %425 = vst [vmem:[#allocation4 + $0x30] sm:$0xff] 0
        %426 = vst [vmem:[#allocation4 + $0x38] sm:$0xff] 0
        %427 = vst.msk [vmem:[#allocation4 + $0x40] sm:$0xff] %vm420, 0
        %428 = vst [vmem:[#allocation5] sm:$0xff] 0.0
        %429 = vst [vmem:[#allocation6] sm:$0xff] 0.0
        %430 = vst [vmem:[#allocation7] sm:$0xff] 0
        %431 = vst [vmem:[#allocation7 + $0x8] sm:$0xff] 0
        %432 = vst.msk [vmem:[#allocation7 + $0x10] sm:$0xff] %vm420, 0
        %433 = vst [vmem:[#allocation7 + $0x18] sm:$0xff] 0
        %434 = vst [vmem:[#allocation7 + $0x20] sm:$0xff] 0
        %435 = vst.msk [vmem:[#allocation7 + $0x28] sm:$0xff] %vm420, 0
        %436 = vst [vmem:[#allocation7 + $0x30] sm:$0xff] 0
        %437 = vst [vmem:[#allocation7 + $0x38] sm:$0xff] 0
        %438 = vst.msk [vmem:[#allocation7 + $0x40] sm:$0xff] %vm420, 0
      $region52: #{convlstm_en_forward.1} parent=47 // pred_fallthru
        _
      %v439 = vlaneseq
      %v440 = vand.u32 %v439, 127
      %v441 = vadd.s32 %v440, 128
      %vm442 = vcmp.lt.s32.totalorder %v440, 0
      %v443 = vsub.s32 0, %v440
      %v444 = vsel %vm442, %v443, %v440
      %v445 = vshrl.u32 %v444, 4
      %v446 = vand.u32 %v444, 15
      %v447 = vsub.s32 0, %v446
      %v448 = vsel %vm442, %v447, %v446
      %vm449 = vcmp.lt.s32.totalorder %v441, 0
      %v450 = vsub.s32 0, %v441
      %v451 = vsel %vm449, %v450, %v441
      %v452 = vshrl.u32 %v451, 4
      %v453 = vand.u32 %v451, 15
      %v454 = vsub.s32 0, %v453
      %v455 = vsel %vm449, %v454, %v453
      %vm456 = vcmp.ne.s32.totalorder %v448, 0
      %vm457 = vcmp.ne.s32.totalorder %v455, 0
      %vm458 = vcmp.lt.s32.totalorder %v448, 0
      %vm459 = vcmp.lt.s32.totalorder %v455, 0
      %vm460 = vmand %vm458, %vm456
      %vm461 = vmand %vm459, %vm457
      %v462 = vadd.s32 %v448, 16
      %v463 = vadd.s32 %v455, 16
      %v464 = vsel %vm460, %v462, %v448
      %v465 = vsel %vm461, %v463, %v455
      %vm466 = vcmp.ge.s32.totalorder %v464, 1
      %vm467 = vcmp.ge.s32.totalorder %v465, 1
      %vm468 = vcmp.lt.s32.totalorder %v464, 17
      %vm469 = vcmp.lt.s32.totalorder %v465, 17
      %vm470 = vmand %vm466, %vm468
      %vm471 = vmand %vm467, %vm469
      %vm472 = vcmp.ge.s32.totalorder %v464, 4294967295
      %vm473 = vcmp.ge.s32.totalorder %v465, 4294967295
      %vm474 = vcmp.lt.s32.totalorder %v464, 15
      %vm475 = vcmp.lt.s32.totalorder %v465, 15
      %vm476 = vmand %vm472, %vm474
      %vm477 = vmand %vm473, %vm475
      %p478 = scmp.lt.s32.totalorder %s23, 3
      %v479 = vld [vmem:[%s364] sm:$0xff]
      %v480 = vld [vmem:[#allocation5] sm:$0xff]
      %v481 = vmax.f32 %v480, 0.0
      %s482 = scalar_select %p478, 1, 0
      %v483 = vstv %s482
      %vm484 = vcmp.eq.s32.totalorder %v483, 1
      %v485 = vsel %vm484, %v479, %v481
      %v486 = vld [vmem:[%s379] sm:$0x3]
      %v487 = vld [vmem:[%s375] sm:$0x1f]
      %v488 = vld [vmem:[%s375 + $0x8] sm:$0x1f]
      %v490 = vcombine.high %v485, %v485
      %v493 = vlaneseq
      %v494 = vshrl.u32 %v493, 7
      %v495 = vsub.s32 0, %v494
      %v496 = vrot.slane %v486, %v495
      %v497 = vlaneseq
      %v498 = vshrl.u32 %v497, 7
      %v499 = vsub.s32 1, %v498
      %v500 = vrot.slane %v486, %v499
      %v505 = vrot.slane %v487, 3
      %v506 = vrot.slane %v488, 3
      %vm509 = vcmask 1043456
      %v510 = vsel %vm509, %v485, %v496
      %v511 = vsel %vm509, %v490, %v500
      %vm512 = vcmask 1044480
      %v513 = vsel %vm512, %v510, %v505
      %v514 = vsel %vm512, %v511, %v506
      %v515 = vpack.c.bf16 %v505, %v513
      %v516 = vpack.c.bf16 %v506, %v514
      %v517 = vld [vmem:[#allocation2] sm:$0xff]
      %v518 = vld [vmem:[#allocation2 + $0x8] sm:$0xff]
      %v519 = vld [vmem:[#allocation2 + $0x10] sm:$0xff]
      %v520 = vld [vmem:[#allocation2 + $0x18] sm:$0xff]
      %v521 = vld [vmem:[#allocation2 + $0x20] sm:$0xff]
      %v522 = vld [vmem:[#allocation2 + $0x28] sm:$0xff]
      %v523 = vld [vmem:[#allocation2 + $0x30] sm:$0xff]
      %v524 = vld [vmem:[#allocation2 + $0x38] sm:$0xff]
      %v525 = vpack.c.bf16 %v519, %v517
      %v526 = vpack.c.bf16 %v520, %v518
      %v527 = vpack.c.bf16 %v523, %v521
      %v528 = vpack.c.bf16 %v524, %v522
      %vm533 = vcmask 1044480
      %v534 = vrot.slane %v525, 3
      %v535 = vrot.slane %v526, 3
      %v536 = vrot.slane %v527, 3
      %v537 = vsel %vm533, %v534, %v536
      %v538 = vrot.slane %v528, 3
      %v539 = vsel %vm533, %v535, %v538
      %v542 = vsel %vm512, %v515, %v534
      %v545 = vsel %vm512, %v516, %v535
      %v548 = vsel %vm512, %v536, 0
      %v550 = vsel %vm512, %v538, 0
      %555 = vrot.lane.b32.xlu0 %v542, 17
      %v556 = vpop.permute.xlu0 %555
      %557 = vrot.lane.b32.xlu0 %v545, 17
      %v558 = vpop.permute.xlu0 %557
      %559 = vrot.lane.b32.xlu0 %v537, 17
      %v560 = vpop.permute.xlu0 %559
      %561 = vrot.lane.b32.xlu0 %v539, 17
      %v562 = vpop.permute.xlu0 %561
      %563 = vrot.lane.b32.xlu0 %v548, 17
      %v564 = vpop.permute.xlu0 %563
      %565 = vrot.lane.b32.xlu0 %v550, 17
      %v566 = vpop.permute.xlu0 %565
      %vm567 = vcmask 138240
      %v568 = vsel %vm567, %v556, %v558
      %v569 = vsel %vm567, %v560, %v562
      %v570 = vsel %vm567, %v564, %v566
      %vm580 = vcmask 1047688
      %581 = vst.msk [vmem:[#allocation4] sm:$0xff] %vm580, %v556
      %582 = vst [vmem:[#allocation4 + $0x8] sm:$0xff] %v568
      %vm583 = vcmask 138240
      %584 = vst.msk [vmem:[#allocation4 + $0x10] sm:$0xff] %vm583, %v558
      %585 = vst.msk [vmem:[#allocation4 + $0x18] sm:$0xff] %vm580, %v560
      %586 = vst [vmem:[#allocation4 + $0x20] sm:$0xff] %v569
      %587 = vst.msk [vmem:[#allocation4 + $0x28] sm:$0xff] %vm583, %v562
      %588 = vst.msk [vmem:[#allocation4 + $0x30] sm:$0xff] %vm580, %v564
      %589 = vst [vmem:[#allocation4 + $0x38] sm:$0xff] %v570
      %590 = vst.msk [vmem:[#allocation4 + $0x40] sm:$0xff] %vm583, %v566
      %v591 = vld [vmem:[#allocation4] sm:$0xff]
      %v592 = vld [vmem:[#allocation4 + $0x8] sm:$0xff]
      %v593 = vld [vmem:[#allocation4 + $0x18] sm:$0xff]
      %v594 = vld [vmem:[#allocation4 + $0x20] sm:$0xff]
      %v595 = vld [vmem:[#allocation4 + $0x30] sm:$0xff]
      %v596 = vld [vmem:[#allocation4 + $0x38] sm:$0xff]
      %v597 = vsel %vm470, 1, 0
      %v598 = vsel %vm471, 1, 0
      %vm599 = vcmp.eq.s32.totalorder %v597, 1
      %vm600 = vcmp.eq.s32.totalorder %v598, 1
      %vm601 = vmpackc.low %vm600, %vm599
      %v602 = vsel %vm601, 65537, 0
      %v603 = vlaneseq
      %v604 = vshrl.u32 %v603, 7
      %v605 = vsub.s32 0, %v604
      %v606 = vrot.slane %v602, %v605
      %v607 = vlaneseq
      %v608 = vshrl.u32 %v607, 7
      %v609 = vsub.s32 4, %v608
      %v610 = vrot.slane %v602, %v609
      %vm611 = vcmp.ne.s16.totalorder %v606, 0
      %vm612 = vcmp.ne.s16.totalorder %v610, 0
      %v613 = vsel %vm611, %v591, 0
      %v614 = vsel %vm612, %v592, 0
      %v615 = vsel %vm611, %v593, 0
      %v616 = vsel %vm612, %v594, 0
      %v617 = vsel %vm611, %v595, 0
      %v618 = vsel %vm612, %v596, 0
      %v619 = vld [vmem:[#allocation4 + $0x10] sm:$0xff]
      %v620 = vld [vmem:[#allocation4 + $0x28] sm:$0xff]
      %v621 = vld [vmem:[#allocation4 + $0x40] sm:$0xff]
      %v622 = vsel %vm476, 1, 0
      %v623 = vsel %vm477, 1, 0
      %vm624 = vcmp.eq.s32.totalorder %v622, 1
      %vm625 = vcmp.eq.s32.totalorder %v623, 1
      %vm626 = vmpackc.low %vm625, %vm624
      %v627 = vsel %vm626, 65537, 0
      %v628 = vlaneseq
      %v629 = vshrl.u32 %v628, 7
      %v630 = vsub.s32 0, %v629
      %v631 = vrot.slane %v627, %v630
      %v632 = vlaneseq
      %v633 = vshrl.u32 %v632, 7
      %v634 = vsub.s32 4, %v633
      %v635 = vrot.slane %v627, %v634
      %636 = vrot.lane.b32.xlu0 %v631, 2
      %v637 = vpop.permute.xlu0 %636
      %638 = vrot.lane.b32.xlu0 %v635, 2
      %v639 = vpop.permute.xlu0 %638
      %vm640 = vcmask 15360
      %v641 = vsel %vm640, %v637, %v639
      %vm642 = vcmp.ne.s16.totalorder %v637, 0
      %vm643 = vcmp.ne.s16.totalorder %v641, 0
      %vm644 = vcmp.ne.s16.totalorder %v639, 0
      %v645 = vsel %vm642, %v591, 0
      %v646 = vsel %vm643, %v592, 0
      %v647 = vsel %vm644, %v619, 0
      %v648 = vsel %vm642, %v593, 0
      %v649 = vsel %vm643, %v594, 0
      %v650 = vsel %vm644, %v620, 0
      %v651 = vsel %vm642, %v595, 0
      %v652 = vsel %vm643, %v596, 0
      %v653 = vsel %vm644, %v621, 0
      %654 = vrot.lane.b32.xlu0 %v606, 16
      %v655 = vpop.permute.xlu0 %654
      %656 = vrot.lane.b32.xlu0 %v610, 16
      %v657 = vpop.permute.xlu0 %656
      %vm658 = vcmask 130048
      %v659 = vsel %vm658, %v655, %v657
      %vm660 = vcmp.ne.s16.totalorder %v655, 0
      %vm661 = vcmp.ne.s16.totalorder %v659, 0
      %vm662 = vcmp.ne.s16.totalorder %v657, 0
      %v663 = vsel %vm660, %v591, 0
      %v664 = vsel %vm661, %v592, 0
      %v665 = vsel %vm662, %v619, 0
      %v666 = vsel %vm660, %v593, 0
      %v667 = vsel %vm661, %v594, 0
      %v668 = vsel %vm662, %v620, 0
      %v669 = vsel %vm660, %v595, 0
      %v670 = vsel %vm661, %v596, 0
      %v671 = vsel %vm662, %v621, 0
      %672 = vrot.lane.b32.xlu0 %v631, 18
      %v673 = vpop.permute.xlu0 %672
      %674 = vrot.lane.b32.xlu0 %v635, 18
      %v675 = vpop.permute.xlu0 %674
      %vm676 = vcmask 146432
      %v677 = vsel %vm676, %v673, %v675
      %vm678 = vcmp.ne.s16.totalorder %v673, 0
      %vm679 = vcmp.ne.s16.totalorder %v677, 0
      %vm680 = vcmp.ne.s16.totalorder %v675, 0
      %v681 = vsel %vm678, %v591, 0
      %v682 = vsel %vm679, %v592, 0
      %v683 = vsel %vm680, %v619, 0
      %v684 = vsel %vm678, %v593, 0
      %v685 = vsel %vm679, %v594, 0
      %v686 = vsel %vm680, %v620, 0
      %v687 = vsel %vm678, %v595, 0
      %v688 = vsel %vm679, %v596, 0
      %v689 = vsel %vm680, %v621, 0
      %690 = vrot.lane.b32.xlu0 %v606, 32
      %v691 = vpop.permute.xlu0 %690
      %692 = vrot.lane.b32.xlu0 %v610, 32
      %v693 = vpop.permute.xlu0 %692
      %vm694 = vcmask 261120
      %v695 = vsel %vm694, %v691, %v693
      %vm696 = vcmp.ne.s16.totalorder %v691, 0
      %vm697 = vcmp.ne.s16.totalorder %v695, 0
      %vm698 = vcmp.ne.s16.totalorder %v693, 0
      %v699 = vsel %vm696, %v591, 0
      %v700 = vsel %vm697, %v592, 0
      %v701 = vsel %vm698, %v619, 0
      %v702 = vsel %vm696, %v593, 0
      %v703 = vsel %vm697, %v594, 0
      %v704 = vsel %vm698, %v620, 0
      %v705 = vsel %vm696, %v595, 0
      %v706 = vsel %vm697, %v596, 0
      %v707 = vsel %vm698, %v621, 0
      %708 = vrot.lane.b32.xlu0 %v631, 34
      %v709 = vpop.permute.xlu0 %708
      %710 = vrot.lane.b32.xlu0 %v635, 34
      %v711 = vpop.permute.xlu0 %710
      %vm712 = vcmask 277504
      %v713 = vsel %vm712, %v709, %v711
      %vm714 = vcmp.ne.s16.totalorder %v709, 0
      %vm715 = vcmp.ne.s16.totalorder %v713, 0
      %vm716 = vcmp.ne.s16.totalorder %v711, 0
      %v717 = vsel %vm714, %v591, 0
      %v718 = vsel %vm715, %v592, 0
      %v719 = vsel %vm716, %v619, 0
      %v720 = vsel %vm714, %v593, 0
      %v721 = vsel %vm715, %v594, 0
      %v722 = vsel %vm716, %v620, 0
      %v723 = vsel %vm714, %v595, 0
      %v724 = vsel %vm715, %v596, 0
      %v725 = vsel %vm716, %v621, 0
      %735 = vrot.lane.b32.xlu0 %v591, 127
      %v736 = vpop.permute.xlu0 %735
      %737 = vrot.lane.b32.xlu0 %v592, 127
      %v738 = vpop.permute.xlu0 %737
      %739 = vrot.lane.b32.xlu0 %v619, 127
      %v740 = vpop.permute.xlu0 %739
      %741 = vrot.lane.b32.xlu0 %v593, 127
      %v742 = vpop.permute.xlu0 %741
      %743 = vrot.lane.b32.xlu0 %v594, 127
      %v744 = vpop.permute.xlu0 %743
      %745 = vrot.lane.b32.xlu0 %v620, 127
      %v746 = vpop.permute.xlu0 %745
      %747 = vrot.lane.b32.xlu0 %v595, 127
      %v748 = vpop.permute.xlu0 %747
      %749 = vrot.lane.b32.xlu0 %v596, 127
      %v750 = vpop.permute.xlu0 %749
      %751 = vrot.lane.b32.xlu0 %v621, 127
      %v752 = vpop.permute.xlu0 %751
      %vm753 = vcmask 1039360
      %v754 = vsel %vm753, %v736, %v738
      %v755 = vsel %vm753, %v738, %v740
      %v756 = vsel %vm753, %v742, %v744
      %v757 = vsel %vm753, %v744, %v746
      %v758 = vsel %vm753, %v748, %v750
      %v759 = vsel %vm753, %v750, %v752
      %775 = vrot.lane.b32.xlu0 %v645, 126
      %v776 = vpop.permute.xlu0 %775
      %777 = vrot.lane.b32.xlu0 %v646, 126
      %v778 = vpop.permute.xlu0 %777
      %779 = vrot.lane.b32.xlu0 %v647, 126
      %v780 = vpop.permute.xlu0 %779
      %781 = vrot.lane.b32.xlu0 %v648, 126
      %v782 = vpop.permute.xlu0 %781
      %783 = vrot.lane.b32.xlu0 %v649, 126
      %v784 = vpop.permute.xlu0 %783
      %785 = vrot.lane.b32.xlu0 %v650, 126
      %v786 = vpop.permute.xlu0 %785
      %787 = vrot.lane.b32.xlu0 %v651, 126
      %v788 = vpop.permute.xlu0 %787
      %789 = vrot.lane.b32.xlu0 %v652, 126
      %v790 = vpop.permute.xlu0 %789
      %791 = vrot.lane.b32.xlu0 %v653, 126
      %v792 = vpop.permute.xlu0 %791
      %vm793 = vcmask 1031168
      %v794 = vsel %vm793, %v776, %v778
      %v795 = vsel %vm793, %v778, %v780
      %v796 = vsel %vm793, %v782, %v784
      %v797 = vsel %vm793, %v784, %v786
      %v798 = vsel %vm793, %v788, %v790
      %v799 = vsel %vm793, %v790, %v792
      %815 = vrot.lane.b32.xlu0 %v663, 112
      %v816 = vpop.permute.xlu0 %815
      %817 = vrot.lane.b32.xlu0 %v664, 112
      %v818 = vpop.permute.xlu0 %817
      %819 = vrot.lane.b32.xlu0 %v665, 112
      %v820 = vpop.permute.xlu0 %819
      %821 = vrot.lane.b32.xlu0 %v666, 112
      %v822 = vpop.permute.xlu0 %821
      %823 = vrot.lane.b32.xlu0 %v667, 112
      %v824 = vpop.permute.xlu0 %823
      %825 = vrot.lane.b32.xlu0 %v668, 112
      %v826 = vpop.permute.xlu0 %825
      %827 = vrot.lane.b32.xlu0 %v669, 112
      %v828 = vpop.permute.xlu0 %827
      %829 = vrot.lane.b32.xlu0 %v670, 112
      %v830 = vpop.permute.xlu0 %829
      %831 = vrot.lane.b32.xlu0 %v671, 112
      %v832 = vpop.permute.xlu0 %831
      %vm833 = vcmask 916480
      %v834 = vsel %vm833, %v816, %v818
      %v835 = vsel %vm833, %v818, %v820
      %v836 = vsel %vm833, %v822, %v824
      %v837 = vsel %vm833, %v824, %v826
      %v838 = vsel %vm833, %v828, %v830
      %v839 = vsel %vm833, %v830, %v832
      %846 = vrot.lane.b32.xlu0 %v591, 111
      %v847 = vpop.permute.xlu0 %846
      %848 = vrot.lane.b32.xlu0 %v592, 111
      %v849 = vpop.permute.xlu0 %848
      %850 = vrot.lane.b32.xlu0 %v619, 111
      %v851 = vpop.permute.xlu0 %850
      %852 = vrot.lane.b32.xlu0 %v593, 111
      %v853 = vpop.permute.xlu0 %852
      %854 = vrot.lane.b32.xlu0 %v594, 111
      %v855 = vpop.permute.xlu0 %854
      %856 = vrot.lane.b32.xlu0 %v620, 111
      %v857 = vpop.permute.xlu0 %856
      %858 = vrot.lane.b32.xlu0 %v595, 111
      %v859 = vpop.permute.xlu0 %858
      %860 = vrot.lane.b32.xlu0 %v596, 111
      %v861 = vpop.permute.xlu0 %860
      %862 = vrot.lane.b32.xlu0 %v621, 111
      %v863 = vpop.permute.xlu0 %862
      %vm864 = vcmask 908288
      %v865 = vsel %vm864, %v847, %v849
      %v866 = vsel %vm864, %v849, %v851
      %v867 = vsel %vm864, %v853, %v855
      %v868 = vsel %vm864, %v855, %v857
      %v869 = vsel %vm864, %v859, %v861
      %v870 = vsel %vm864, %v861, %v863
      %886 = vrot.lane.b32.xlu0 %v681, 110
      %v887 = vpop.permute.xlu0 %886
      %888 = vrot.lane.b32.xlu0 %v682, 110
      %v889 = vpop.permute.xlu0 %888
      %890 = vrot.lane.b32.xlu0 %v683, 110
      %v891 = vpop.permute.xlu0 %890
      %892 = vrot.lane.b32.xlu0 %v684, 110
      %v893 = vpop.permute.xlu0 %892
      %894 = vrot.lane.b32.xlu0 %v685, 110
      %v895 = vpop.permute.xlu0 %894
      %896 = vrot.lane.b32.xlu0 %v686, 110
      %v897 = vpop.permute.xlu0 %896
      %898 = vrot.lane.b32.xlu0 %v687, 110
      %v899 = vpop.permute.xlu0 %898
      %900 = vrot.lane.b32.xlu0 %v688, 110
      %v901 = vpop.permute.xlu0 %900
      %902 = vrot.lane.b32.xlu0 %v689, 110
      %v903 = vpop.permute.xlu0 %902
      %vm904 = vcmask 900096
      %v905 = vsel %vm904, %v887, %v889
      %v906 = vsel %vm904, %v889, %v891
      %v907 = vsel %vm904, %v893, %v895
      %v908 = vsel %vm904, %v895, %v897
      %v909 = vsel %vm904, %v899, %v901
      %v910 = vsel %vm904, %v901, %v903
      %926 = vrot.lane.b32.xlu0 %v699, 96
      %v927 = vpop.permute.xlu0 %926
      %928 = vrot.lane.b32.xlu0 %v700, 96
      %v929 = vpop.permute.xlu0 %928
      %930 = vrot.lane.b32.xlu0 %v701, 96
      %v931 = vpop.permute.xlu0 %930
      %932 = vrot.lane.b32.xlu0 %v702, 96
      %v933 = vpop.permute.xlu0 %932
      %934 = vrot.lane.b32.xlu0 %v703, 96
      %v935 = vpop.permute.xlu0 %934
      %936 = vrot.lane.b32.xlu0 %v704, 96
      %v937 = vpop.permute.xlu0 %936
      %938 = vrot.lane.b32.xlu0 %v705, 96
      %v939 = vpop.permute.xlu0 %938
      %940 = vrot.lane.b32.xlu0 %v706, 96
      %v941 = vpop.permute.xlu0 %940
      %942 = vrot.lane.b32.xlu0 %v707, 96
      %v943 = vpop.permute.xlu0 %942
      %vm944 = vcmask 785408
      %v945 = vsel %vm944, %v927, %v929
      %v946 = vsel %vm944, %v929, %v931
      %v947 = vsel %vm944, %v933, %v935
      %v948 = vsel %vm944, %v935, %v937
      %v949 = vsel %vm944, %v939, %v941
      %v950 = vsel %vm944, %v941, %v943
      %957 = vrot.lane.b32.xlu0 %v591, 95
      %v958 = vpop.permute.xlu0 %957
      %959 = vrot.lane.b32.xlu0 %v592, 95
      %v960 = vpop.permute.xlu0 %959
      %961 = vrot.lane.b32.xlu0 %v619, 95
      %v962 = vpop.permute.xlu0 %961
      %963 = vrot.lane.b32.xlu0 %v593, 95
      %v964 = vpop.permute.xlu0 %963
      %965 = vrot.lane.b32.xlu0 %v594, 95
      %v966 = vpop.permute.xlu0 %965
      %967 = vrot.lane.b32.xlu0 %v620, 95
      %v968 = vpop.permute.xlu0 %967
      %969 = vrot.lane.b32.xlu0 %v595, 95
      %v970 = vpop.permute.xlu0 %969
      %971 = vrot.lane.b32.xlu0 %v596, 95
      %v972 = vpop.permute.xlu0 %971
      %973 = vrot.lane.b32.xlu0 %v621, 95
      %v974 = vpop.permute.xlu0 %973
      %vm975 = vcmask 777216
      %v976 = vsel %vm975, %v958, %v960
      %v977 = vsel %vm975, %v960, %v962
      %v978 = vsel %vm975, %v964, %v966
      %v979 = vsel %vm975, %v966, %v968
      %v980 = vsel %vm975, %v970, %v972
      %v981 = vsel %vm975, %v972, %v974
      %997 = vrot.lane.b32.xlu0 %v717, 94
      %v998 = vpop.permute.xlu0 %997
      %999 = vrot.lane.b32.xlu0 %v718, 94
      %v1000 = vpop.permute.xlu0 %999
      %1001 = vrot.lane.b32.xlu0 %v719, 94
      %v1002 = vpop.permute.xlu0 %1001
      %1003 = vrot.lane.b32.xlu0 %v720, 94
      %v1004 = vpop.permute.xlu0 %1003
      %1005 = vrot.lane.b32.xlu0 %v721, 94
      %v1006 = vpop.permute.xlu0 %1005
      %1007 = vrot.lane.b32.xlu0 %v722, 94
      %v1008 = vpop.permute.xlu0 %1007
      %1009 = vrot.lane.b32.xlu0 %v723, 94
      %v1010 = vpop.permute.xlu0 %1009
      %1011 = vrot.lane.b32.xlu0 %v724, 94
      %v1012 = vpop.permute.xlu0 %1011
      %1013 = vrot.lane.b32.xlu0 %v725, 94
      %v1014 = vpop.permute.xlu0 %1013
      %vm1015 = vcmask 769024
      %v1016 = vsel %vm1015, %v998, %v1000
      %v1017 = vsel %vm1015, %v1000, %v1002
      %v1018 = vsel %vm1015, %v1004, %v1006
      %v1019 = vsel %vm1015, %v1006, %v1008
      %v1020 = vsel %vm1015, %v1010, %v1012
      %v1021 = vsel %vm1015, %v1012, %v1014
      %v1028 = vld [vmem:[%s3] sm:$0xff]
      %v1029 = vld [vmem:[%s3 + $0x8] sm:$0xff]
      %v1030 = vld [vmem:[%s3 + $0x10] sm:$0xff]
      %v1031 = vld [vmem:[%s3 + $0x18] sm:$0xff]
      %v1032 = vld [vmem:[%s3 + $0x20] sm:$0xff]
      %v1033 = vld [vmem:[%s3 + $0x28] sm:$0xff]
      %v1034 = vld [vmem:[%s3 + $0x30] sm:$0xff]
      %v1035 = vld [vmem:[%s3 + $0x38] sm:$0xff]
      %v1036 = vld [vmem:[%s3 + $0x40] sm:$0xff]
      %v1037 = vld [vmem:[%s3 + $0x48] sm:$0xff]
      %v1038 = vld [vmem:[%s3 + $0x50] sm:$0xff]
      %v1039 = vld [vmem:[%s3 + $0x58] sm:$0xff]
      %v1040 = vld [vmem:[%s3 + $0x60] sm:$0xff]
      %v1041 = vld [vmem:[%s3 + $0x68] sm:$0xff]
      %v1042 = vld [vmem:[%s3 + $0x70] sm:$0xff]
      %v1043 = vld [vmem:[%s3 + $0x78] sm:$0xff]
      %v1044 = vld [vmem:[%s3 + $0x80] sm:$0xff]
      %v1045 = vld [vmem:[%s3 + $0x88] sm:$0xff]
      %v1046 = vld [vmem:[%s3 + $0x90] sm:$0xff]
      %v1047 = vld [vmem:[%s3 + $0x98] sm:$0xff]
      %v1048 = vld [vmem:[%s3 + $0xa0] sm:$0xff]
      %v1049 = vld [vmem:[%s3 + $0xa8] sm:$0xff]
      %v1050 = vld [vmem:[%s3 + $0xb0] sm:$0xff]
      %v1051 = vld [vmem:[%s3 + $0xb8] sm:$0xff]
      %v1052 = vld [vmem:[%s3 + $0xc0] sm:$0xff]
      %v1053 = vld [vmem:[%s3 + $0xc8] sm:$0xff]
      %v1054 = vld [vmem:[%s3 + $0xd0] sm:$0xff]
      %v1055 = vld [vmem:[%s3 + $0xd8] sm:$0xff]
      %v1056 = vld [vmem:[%s3 + $0xe0] sm:$0xff]
      %v1057 = vld [vmem:[%s3 + $0xe8] sm:$0xff]
      %v1058 = vld [vmem:[%s3 + $0xf0] sm:$0xff]
      %v1059 = vld [vmem:[%s3 + $0xf8] sm:$0xff]
      %v1060 = vld [vmem:[%s4] sm:$0xff]
      %v1061 = vld [vmem:[%s4 + $0x8] sm:$0xff]
      %v1062 = vld [vmem:[%s4 + $0x10] sm:$0xff]
      %v1063 = vld [vmem:[%s4 + $0x18] sm:$0xff]
      %v1064 = vld [vmem:[%s4 + $0x20] sm:$0xff]
      %v1065 = vld [vmem:[%s4 + $0x28] sm:$0xff]
      %v1066 = vld [vmem:[%s4 + $0x30] sm:$0xff]
      %v1067 = vld [vmem:[%s4 + $0x38] sm:$0xff]
      %v1068 = vld [vmem:[%s4 + $0x40] sm:$0xff]
      %v1069 = vld [vmem:[%s4 + $0x48] sm:$0xff]
      %v1070 = vld [vmem:[%s4 + $0x50] sm:$0xff]
      %v1071 = vld [vmem:[%s4 + $0x58] sm:$0xff]
      %v1072 = vld [vmem:[%s4 + $0x60] sm:$0xff]
      %v1073 = vld [vmem:[%s4 + $0x68] sm:$0xff]
      %v1074 = vld [vmem:[%s4 + $0x70] sm:$0xff]
      %v1075 = vld [vmem:[%s4 + $0x78] sm:$0xff]
      %1077 = vset.pattern.permute.xlu0 0
      %1078 = vperm.xlu0 %1077, %v1060
      %v1079 = vpop.permute.xlu0 %1078
      %1082 = vset.pattern.permute.xlu0 0
      %1083 = vperm.xlu0 %1082, %v1061
      %v1084 = vpop.permute.xlu0 %1083
      %1087 = vset.pattern.permute.xlu0 0
      %1088 = vperm.xlu0 %1087, %v1062
      %v1089 = vpop.permute.xlu0 %1088
      %1092 = vset.pattern.permute.xlu0 0
      %1093 = vperm.xlu0 %1092, %v1063
      %v1094 = vpop.permute.xlu0 %1093
      %1097 = vset.pattern.permute.xlu0 0
      %1098 = vperm.xlu0 %1097, %v1064
      %v1099 = vpop.permute.xlu0 %1098
      %1102 = vset.pattern.permute.xlu0 0
      %1103 = vperm.xlu0 %1102, %v1065
      %v1104 = vpop.permute.xlu0 %1103
      %1107 = vset.pattern.permute.xlu0 0
      %1108 = vperm.xlu0 %1107, %v1066
      %v1109 = vpop.permute.xlu0 %1108
      %1112 = vset.pattern.permute.xlu0 0
      %1113 = vperm.xlu0 %1112, %v1067
      %v1114 = vpop.permute.xlu0 %1113
      %1117 = vset.pattern.permute.xlu0 0
      %1118 = vperm.xlu0 %1117, %v1068
      %v1119 = vpop.permute.xlu0 %1118
      %1122 = vset.pattern.permute.xlu0 0
      %1123 = vperm.xlu0 %1122, %v1069
      %v1124 = vpop.permute.xlu0 %1123
      %1127 = vset.pattern.permute.xlu0 0
      %1128 = vperm.xlu0 %1127, %v1070
      %v1129 = vpop.permute.xlu0 %1128
      %1132 = vset.pattern.permute.xlu0 0
      %1133 = vperm.xlu0 %1132, %v1071
      %v1134 = vpop.permute.xlu0 %1133
      %1137 = vset.pattern.permute.xlu0 0
      %1138 = vperm.xlu0 %1137, %v1072
      %v1139 = vpop.permute.xlu0 %1138
      %1142 = vset.pattern.permute.xlu0 0
      %1143 = vperm.xlu0 %1142, %v1073
      %v1144 = vpop.permute.xlu0 %1143
      %1147 = vset.pattern.permute.xlu0 0
      %1148 = vperm.xlu0 %1147, %v1074
      %v1149 = vpop.permute.xlu0 %1148
      %1152 = vset.pattern.permute.xlu0 0
      %1153 = vperm.xlu0 %1152, %v1075
      %v1154 = vpop.permute.xlu0 %1153
      %v1188 = vunpack.c.l.b16 %v1028
      %v1189 = vunpack.c.h.b16 %v1028
      %v1190 = vunpack.c.l.b16 %v1029
      %v1191 = vunpack.c.h.b16 %v1029
      %v1192 = vunpack.c.l.b16 %v1030
      %v1193 = vunpack.c.h.b16 %v1030
      %v1194 = vunpack.c.l.b16 %v1031
      %v1195 = vunpack.c.h.b16 %v1031
      %v1196 = vunpack.c.l.b16 %v1032
      %v1197 = vunpack.c.h.b16 %v1032
      %v1198 = vunpack.c.l.b16 %v1033
      %v1199 = vunpack.c.h.b16 %v1033
      %v1200 = vunpack.c.l.b16 %v1034
      %v1201 = vunpack.c.h.b16 %v1034
      %v1202 = vunpack.c.l.b16 %v1035
      %v1203 = vunpack.c.h.b16 %v1035
      %v1204 = vunpack.c.l.b16 %v1036
      %v1205 = vunpack.c.h.b16 %v1036
      %v1206 = vunpack.c.l.b16 %v1037
      %v1207 = vunpack.c.h.b16 %v1037
      %v1208 = vunpack.c.l.b16 %v1038
      %v1209 = vunpack.c.h.b16 %v1038
      %v1210 = vunpack.c.l.b16 %v1039
      %v1211 = vunpack.c.h.b16 %v1039
      %v1212 = vunpack.c.l.b16 %v1040
      %v1213 = vunpack.c.h.b16 %v1040
      %v1214 = vunpack.c.l.b16 %v1041
      %v1215 = vunpack.c.h.b16 %v1041
      %v1216 = vunpack.c.l.b16 %v1042
      %v1217 = vunpack.c.h.b16 %v1042
      %v1218 = vunpack.c.l.b16 %v1043
      %v1219 = vunpack.c.h.b16 %v1043
      %v1220 = vunpack.c.l.b16 %v1044
      %v1221 = vunpack.c.h.b16 %v1044
      %v1222 = vunpack.c.l.b16 %v1045
      %v1223 = vunpack.c.h.b16 %v1045
      %v1224 = vunpack.c.l.b16 %v1046
      %v1225 = vunpack.c.h.b16 %v1046
      %v1226 = vunpack.c.l.b16 %v1047
      %v1227 = vunpack.c.h.b16 %v1047
      %v1228 = vunpack.c.l.b16 %v1048
      %v1229 = vunpack.c.h.b16 %v1048
      %v1230 = vunpack.c.l.b16 %v1049
      %v1231 = vunpack.c.h.b16 %v1049
      %v1232 = vunpack.c.l.b16 %v1050
      %v1233 = vunpack.c.h.b16 %v1050
      %v1234 = vunpack.c.l.b16 %v1051
      %v1235 = vunpack.c.h.b16 %v1051
      %v1236 = vunpack.c.l.b16 %v1052
      %v1237 = vunpack.c.h.b16 %v1052
      %v1238 = vunpack.c.l.b16 %v1053
      %v1239 = vunpack.c.h.b16 %v1053
      %v1240 = vunpack.c.l.b16 %v1054
      %v1241 = vunpack.c.h.b16 %v1054
      %v1242 = vunpack.c.l.b16 %v1055
      %v1243 = vunpack.c.h.b16 %v1055
      %v1244 = vunpack.c.l.b16 %v1056
      %v1245 = vunpack.c.h.b16 %v1056
      %v1246 = vunpack.c.l.b16 %v1057
      %v1247 = vunpack.c.h.b16 %v1057
      %v1248 = vunpack.c.l.b16 %v1058
      %v1249 = vunpack.c.h.b16 %v1058
      %v1250 = vunpack.c.l.b16 %v1059
      %v1251 = vunpack.c.h.b16 %v1059
      %v1252 = vpack.c.b16 %v1192, %v1188
      %v1253 = vpack.c.b16 %v1193, %v1189
      %v1254 = vpack.c.b16 %v1194, %v1190
      %v1255 = vpack.c.b16 %v1195, %v1191
      %v1256 = vpack.c.b16 %v1200, %v1196
      %v1257 = vpack.c.b16 %v1201, %v1197
      %v1258 = vpack.c.b16 %v1202, %v1198
      %v1259 = vpack.c.b16 %v1203, %v1199
      %v1260 = vpack.c.b16 %v1208, %v1204
      %v1261 = vpack.c.b16 %v1209, %v1205
      %v1262 = vpack.c.b16 %v1210, %v1206
      %v1263 = vpack.c.b16 %v1211, %v1207
      %v1264 = vpack.c.b16 %v1216, %v1212
      %v1265 = vpack.c.b16 %v1217, %v1213
      %v1266 = vpack.c.b16 %v1218, %v1214
      %v1267 = vpack.c.b16 %v1219, %v1215
      %v1268 = vpack.c.b16 %v1224, %v1220
      %v1269 = vpack.c.b16 %v1225, %v1221
      %v1270 = vpack.c.b16 %v1226, %v1222
      %v1271 = vpack.c.b16 %v1227, %v1223
      %v1272 = vpack.c.b16 %v1232, %v1228
      %v1273 = vpack.c.b16 %v1233, %v1229
      %v1274 = vpack.c.b16 %v1234, %v1230
      %v1275 = vpack.c.b16 %v1235, %v1231
      %v1276 = vpack.c.b16 %v1240, %v1236
      %v1277 = vpack.c.b16 %v1241, %v1237
      %v1278 = vpack.c.b16 %v1242, %v1238
      %v1279 = vpack.c.b16 %v1243, %v1239
      %v1280 = vpack.c.b16 %v1248, %v1244
      %v1281 = vpack.c.b16 %v1249, %v1245
      %v1282 = vpack.c.b16 %v1250, %v1246
      %v1283 = vpack.c.b16 %v1251, %v1247
      %vm1308 = vcmask 392192
      %v1310 = vsel %vm1308, %v1255, 0
      %v1313 = vsel %vm1308, %v1259, 0
      %v1316 = vsel %vm1308, %v1263, 0
      %v1319 = vsel %vm1308, %v1267, 0
      %v1322 = vsel %vm1308, %v1271, 0
      %v1325 = vsel %vm1308, %v1275, 0
      %v1328 = vsel %vm1308, %v1279, 0
      %v1331 = vsel %vm1308, %v1283, 0
      %1333 = vmatprep.subr.bf16.mxu0 %v614
      %1334 = vmatpush1.bf16.msra.mxu0 %v613
      %1335 = vmatprep.subr.bf16.mxu0 %v616
      %1336 = vmatpush1.bf16.msra.mxu0 %v615
      %1337 = vmatprep.subr.bf16.mxu0 %v618
      %1338 = vmatpush1.bf16.msra.mxu0 %v617
      %1339 = vmatprep.subr.bf16.mxu0 %v755
      %1340 = vmatpush1.bf16.msra.mxu0 %v754
      %1341 = vmatprep.subr.bf16.mxu0 %v757
      %1342 = vmatpush1.bf16.msra.mxu0 %v756
      %1343 = vmatprep.subr.bf16.mxu0 %v759
      %1344 = vmatpush1.bf16.msra.mxu0 %v758
      %1345 = vmatprep.subr.bf16.mxu0 %v795
      %1346 = vmatpush1.bf16.msra.mxu0 %v794
      %1347 = vmatprep.subr.bf16.mxu0 %v797
      %1348 = vmatpush1.bf16.msra.mxu0 %v796
      %1349 = vmatprep.subr.bf16.mxu0 %v799
      %1350 = vmatpush1.bf16.msra.mxu0 %v798
      %1351 = vmatprep.subr.bf16.mxu0 %v835
      %1352 = vmatpush1.bf16.msra.mxu0 %v834
      %1353 = vmatprep.subr.bf16.mxu0 %v837
      %1354 = vmatpush1.bf16.msra.mxu0 %v836
      %1355 = vmatprep.subr.bf16.mxu0 %v839
      %1356 = vmatpush1.bf16.msra.mxu0 %v838
      %1357 = vmatprep.subr.bf16.mxu0 %v866
      %1358 = vmatpush1.bf16.msra.mxu0 %v865
      %1359 = vmatprep.subr.bf16.mxu0 %v868
      %1360 = vmatpush1.bf16.msra.mxu0 %v867
      %1361 = vmatprep.subr.bf16.mxu0 %v870
      %1362 = vmatpush1.bf16.msra.mxu0 %v869
      %1363 = vmatprep.subr.bf16.mxu0 %v906
      %1364 = vmatpush1.bf16.msra.mxu0 %v905
      %1365 = vmatprep.mubr.bf16.mxu0 %v1253
      %1366 = vmatmul.mubr.bf16.gmra.mrb[0].mxu0 %v1252
      %v1367 = vpop.f32.mrb[0].mxu0
      %v1368 = vadd.f32 %v1079, %v1367
      %v1369 = vpop.f32.mrb[0].mxu0
      %v1370 = vadd.f32 %v1079, %v1369
      %v1371 = vpop.f32.mrb[0].mxu0
      %v1372 = vadd.f32 %v1084, %v1371
      %v1373 = vpop.f32.mrb[0].mxu0
      %v1374 = vadd.f32 %v1084, %v1373
      %1375 = vmatprep.mubr.bf16.mxu0 %v1257
      %1376 = vmatmul.mubr.bf16.gmra.mrb[0].mxu0 %v1256
      %v1377 = vpop.f32.mrb[0].mxu0
      %v1378 = vadd.f32 %v1089, %v1377
      %v1379 = vpop.f32.mrb[0].mxu0
      %v1380 = vadd.f32 %v1089, %v1379
      %v1381 = vpop.f32.mrb[0].mxu0
      %v1382 = vadd.f32 %v1094, %v1381
      %v1383 = vpop.f32.mrb[0].mxu0
      %v1384 = vadd.f32 %v1094, %v1383
      %1385 = vmatprep.mubr.bf16.mxu0 %v1261
      %1386 = vmatmul.mubr.bf16.gmra.mrb[0].mxu0 %v1260
      %v1387 = vpop.f32.mrb[0].mxu0
      %v1388 = vadd.f32 %v1099, %v1387
      %v1389 = vpop.f32.mrb[0].mxu0
      %v1390 = vadd.f32 %v1099, %v1389
      %v1391 = vpop.f32.mrb[0].mxu0
      %v1392 = vadd.f32 %v1104, %v1391
      %v1393 = vpop.f32.mrb[0].mxu0
      %v1394 = vadd.f32 %v1104, %v1393
      %1395 = vmatprep.mubr.bf16.mxu0 %v1265
      %1396 = vmatmul.mubr.bf16.gmra.mrb[0].mxu0 %v1264
      %v1397 = vpop.f32.mrb[0].mxu0
      %v1398 = vadd.f32 %v1109, %v1397
      %v1399 = vpop.f32.mrb[0].mxu0
      %v1400 = vadd.f32 %v1109, %v1399
      %v1401 = vpop.f32.mrb[0].mxu0
      %v1402 = vadd.f32 %v1114, %v1401
      %v1403 = vpop.f32.mrb[0].mxu0
      %v1404 = vadd.f32 %v1114, %v1403
      %1405 = vmatprep.mubr.bf16.mxu0 %v1269
      %1406 = vmatmul.mubr.bf16.gmra.mrb[0].mxu0 %v1268
      %v1407 = vpop.f32.mrb[0].mxu0
      %v1408 = vadd.f32 %v1119, %v1407
      %v1409 = vpop.f32.mrb[0].mxu0
      %v1410 = vadd.f32 %v1119, %v1409
      %v1411 = vpop.f32.mrb[0].mxu0
      %v1412 = vadd.f32 %v1124, %v1411
      %v1413 = vpop.f32.mrb[0].mxu0
      %v1414 = vadd.f32 %v1124, %v1413
      %1415 = vmatprep.mubr.bf16.mxu0 %v1273
      %1416 = vmatmul.mubr.bf16.gmra.mrb[0].mxu0 %v1272
      %v1417 = vpop.f32.mrb[0].mxu0
      %v1418 = vadd.f32 %v1129, %v1417
      %v1419 = vpop.f32.mrb[0].mxu0
      %v1420 = vadd.f32 %v1129, %v1419
      %v1421 = vpop.f32.mrb[0].mxu0
      %v1422 = vadd.f32 %v1134, %v1421
      %v1423 = vpop.f32.mrb[0].mxu0
      %v1424 = vadd.f32 %v1134, %v1423
      %1425 = vmatprep.mubr.bf16.mxu0 %v1277
      %1426 = vmatmul.mubr.bf16.gmra.mrb[0].mxu0 %v1276
      %v1427 = vpop.f32.mrb[0].mxu0
      %v1428 = vadd.f32 %v1139, %v1427
      %v1429 = vpop.f32.mrb[0].mxu0
      %v1430 = vadd.f32 %v1139, %v1429
      %v1431 = vpop.f32.mrb[0].mxu0
      %v1432 = vadd.f32 %v1144, %v1431
      %v1433 = vpop.f32.mrb[0].mxu0
      %v1434 = vadd.f32 %v1144, %v1433
      %1435 = vmatprep.mubr.bf16.mxu0 %v1281
      %1436 = vmatmul.mubr.bf16.gmra.mrb[0].mxu0 %v1280
      %v1437 = vpop.f32.mrb[0].mxu0
      %v1438 = vadd.f32 %v1149, %v1437
      %v1439 = vpop.f32.mrb[0].mxu0
      %v1440 = vadd.f32 %v1149, %v1439
      %v1441 = vpop.f32.mrb[0].mxu0
      %v1442 = vadd.f32 %v1154, %v1441
      %v1443 = vpop.f32.mrb[0].mxu0
      %v1444 = vadd.f32 %v1154, %v1443
      %1445 = vdwg.mxu0
      %1446 = vmatprep.subr.bf16.mxu0 %v908
      %1447 = vmatpush1.bf16.msra.mxu0 %v907
      %1448 = vmatprep.subr.bf16.mxu0 %v910
      %1449 = vmatpush1.bf16.msra.mxu0 %v909
      %1450 = vmatprep.subr.bf16.mxu0 %v946
      %1451 = vmatpush1.bf16.msra.mxu0 %v945
      %1452 = vmatprep.subr.bf16.mxu0 %v948
      %1453 = vmatpush1.bf16.msra.mxu0 %v947
      %1454 = vmatprep.subr.bf16.mxu0 %v950
      %1455 = vmatpush1.bf16.msra.mxu0 %v949
      %1456 = vmatprep.subr.bf16.mxu0 %v977
      %1457 = vmatpush1.bf16.msra.mxu0 %v976
      %1458 = vmatprep.subr.bf16.mxu0 %v979
      %1459 = vmatpush1.bf16.msra.mxu0 %v978
      %1460 = vmatprep.subr.bf16.mxu0 %v981
      %1461 = vmatpush1.bf16.msra.mxu0 %v980
      %1462 = vmatprep.subr.bf16.mxu0 %v1017
      %1463 = vmatpush1.bf16.msra.mxu0 %v1016
      %1464 = vmatprep.subr.bf16.mxu0 %v1019
      %1465 = vmatpush1.bf16.msra.mxu0 %v1018
      %1466 = vmatprep.subr.bf16.mxu0 %v1021
      %1467 = vmatpush1.bf16.msra.mxu0 %v1020
      %1468 = vmatprep.subr.bf16.mxu0 0
      %1469 = vmatpush1.bf16.msra.mxu0 0
      %1470 = vmatprep.subr.bf16.mxu0 0
      %1471 = vmatpush1.bf16.msra.mxu0 0
      %1472 = vmatprep.subr.bf16.mxu0 0
      %1473 = vmatpush1.bf16.msra.mxu0 0
      %1474 = vmatprep.subr.bf16.mxu0 0
      %1475 = vmatpush1.bf16.msra.mxu0 0
      %1476 = vmatprep.subr.bf16.mxu0 0
      %1477 = vmatpush1.bf16.msra.mxu0 0
      %1478 = vmatprep.mubr.bf16.mxu0 %v1310
      %1479 = vmatmul.mubr.bf16.gmra.mrb[0].mxu0 %v1254
      %v1480 = vpop.f32.mrb[0].mxu0
      %v1481 = vadd.f32 %v1368, %v1480
      %v1482 = vpop.f32.mrb[0].mxu0
      %v1483 = vadd.f32 %v1370, %v1482
      %v1484 = vpop.f32.mrb[0].mxu0
      %v1485 = vadd.f32 %v1372, %v1484
      %v1486 = vpop.f32.mrb[0].mxu0
      %v1487 = vadd.f32 %v1374, %v1486
      %1488 = vmatprep.mubr.bf16.mxu0 %v1313
      %1489 = vmatmul.mubr.bf16.gmra.mrb[0].mxu0 %v1258
      %v1490 = vpop.f32.mrb[0].mxu0
      %v1491 = vadd.f32 %v1378, %v1490
      %v1492 = vpop.f32.mrb[0].mxu0
      %v1493 = vadd.f32 %v1380, %v1492
      %v1494 = vpop.f32.mrb[0].mxu0
      %v1495 = vadd.f32 %v1382, %v1494
      %v1496 = vpop.f32.mrb[0].mxu0
      %v1497 = vadd.f32 %v1384, %v1496
      %1498 = vmatprep.mubr.bf16.mxu0 %v1316
      %1499 = vmatmul.mubr.bf16.gmra.mrb[0].mxu0 %v1262
      %v1500 = vpop.f32.mrb[0].mxu0
      %v1501 = vadd.f32 %v1388, %v1500
      %v1502 = vpop.f32.mrb[0].mxu0
      %v1503 = vadd.f32 %v1390, %v1502
      %v1504 = vpop.f32.mrb[0].mxu0
      %v1505 = vadd.f32 %v1392, %v1504
      %v1506 = vpop.f32.mrb[0].mxu0
      %v1507 = vadd.f32 %v1394, %v1506
      %1508 = vmatprep.mubr.bf16.mxu0 %v1319
      %1509 = vmatmul.mubr.bf16.gmra.mrb[0].mxu0 %v1266
      %v1510 = vpop.f32.mrb[0].mxu0
      %v1511 = vadd.f32 %v1398, %v1510
      %v1512 = vpop.f32.mrb[0].mxu0
      %v1513 = vadd.f32 %v1400, %v1512
      %v1514 = vpop.f32.mrb[0].mxu0
      %v1515 = vadd.f32 %v1402, %v1514
      %v1516 = vpop.f32.mrb[0].mxu0
      %v1517 = vadd.f32 %v1404, %v1516
      %1518 = vmatprep.mubr.bf16.mxu0 %v1322
      %1519 = vmatmul.mubr.bf16.gmra.mrb[0].mxu0 %v1270
      %v1520 = vpop.f32.mrb[0].mxu0
      %v1521 = vadd.f32 %v1408, %v1520
      %v1522 = vpop.f32.mrb[0].mxu0
      %v1523 = vadd.f32 %v1410, %v1522
      %v1524 = vpop.f32.mrb[0].mxu0
      %v1525 = vadd.f32 %v1412, %v1524
      %v1526 = vpop.f32.mrb[0].mxu0
      %v1527 = vadd.f32 %v1414, %v1526
      %1528 = vmatprep.mubr.bf16.mxu0 %v1325
      %1529 = vmatmul.mubr.bf16.gmra.mrb[0].mxu0 %v1274
      %v1530 = vpop.f32.mrb[0].mxu0
      %v1531 = vadd.f32 %v1418, %v1530
      %v1532 = vpop.f32.mrb[0].mxu0
      %v1533 = vadd.f32 %v1420, %v1532
      %v1534 = vpop.f32.mrb[0].mxu0
      %v1535 = vadd.f32 %v1422, %v1534
      %v1536 = vpop.f32.mrb[0].mxu0
      %v1537 = vadd.f32 %v1424, %v1536
      %1538 = vmatprep.mubr.bf16.mxu0 %v1328
      %1539 = vmatmul.mubr.bf16.gmra.mrb[0].mxu0 %v1278
      %v1540 = vpop.f32.mrb[0].mxu0
      %v1541 = vadd.f32 %v1428, %v1540
      %v1542 = vpop.f32.mrb[0].mxu0
      %v1543 = vadd.f32 %v1430, %v1542
      %v1544 = vpop.f32.mrb[0].mxu0
      %v1545 = vadd.f32 %v1432, %v1544
      %v1546 = vpop.f32.mrb[0].mxu0
      %v1547 = vadd.f32 %v1434, %v1546
      %1548 = vmatprep.mubr.bf16.mxu0 %v1331
      %1549 = vmatmul.mubr.bf16.gmra.mrb[0].mxu0 %v1282
      %v1550 = vpop.f32.mrb[0].mxu0
      %v1551 = vadd.f32 %v1438, %v1550
      %v1552 = vpop.f32.mrb[0].mxu0
      %v1553 = vadd.f32 %v1440, %v1552
      %v1554 = vpop.f32.mrb[0].mxu0
      %v1555 = vadd.f32 %v1442, %v1554
      %v1556 = vpop.f32.mrb[0].mxu0
      %v1557 = vadd.f32 %v1444, %v1556
      %1558 = vdwg.mxu0
      %v1559 = vlaneseq
      %v1560 = vshrl.u32 %v1559, 7
      %v1561 = vadd.s32 %v1560, 8
      %v1562 = vadd.s32 %v1560, 16
      %v1563 = vadd.s32 %v1560, 24
      %v1564 = vadd.s32 %v1560, 32
      %v1565 = vadd.s32 %v1560, 40
      %v1566 = vadd.s32 %v1560, 48
      %v1567 = vadd.s32 %v1560, 56
      %v1568 = vadd.s32 %v1560, 64
      %v1569 = vadd.s32 %v1560, 72
      %v1570 = vadd.s32 %v1560, 80
      %v1571 = vadd.s32 %v1560, 88
      %v1572 = vadd.s32 %v1560, 96
      %v1573 = vadd.s32 %v1560, 104
      %v1574 = vadd.s32 %v1560, 112
      %v1575 = vadd.s32 %v1560, 120
      %vm1576 = vcmp.lt.s32.totalorder %v1560, 96
      %vm1577 = vcmp.lt.s32.totalorder %v1561, 96
      %vm1578 = vcmp.lt.s32.totalorder %v1562, 96
      %vm1579 = vcmp.lt.s32.totalorder %v1563, 96
      %vm1580 = vcmp.lt.s32.totalorder %v1564, 96
      %vm1581 = vcmp.lt.s32.totalorder %v1565, 96
      %vm1582 = vcmp.lt.s32.totalorder %v1566, 96
      %vm1583 = vcmp.lt.s32.totalorder %v1567, 96
      %vm1584 = vcmp.lt.s32.totalorder %v1568, 96
      %vm1585 = vcmp.lt.s32.totalorder %v1569, 96
      %vm1586 = vcmp.lt.s32.totalorder %v1570, 96
      %vm1587 = vcmp.lt.s32.totalorder %v1571, 96
      %vm1588 = vcmp.lt.s32.totalorder %v1572, 96
      %vm1589 = vcmp.lt.s32.totalorder %v1573, 96
      %vm1590 = vcmp.lt.s32.totalorder %v1574, 96
      %vm1591 = vcmp.lt.s32.totalorder %v1575, 96
      %v1592 = vsel %vm1576, 0.5, 1.0
      %v1593 = vsel %vm1577, 0.5, 1.0
      %v1594 = vsel %vm1578, 0.5, 1.0
      %v1595 = vsel %vm1579, 0.5, 1.0
      %v1596 = vsel %vm1580, 0.5, 1.0
      %v1597 = vsel %vm1581, 0.5, 1.0
      %v1598 = vsel %vm1582, 0.5, 1.0
      %v1599 = vsel %vm1583, 0.5, 1.0
      %v1600 = vsel %vm1584, 0.5, 1.0
      %v1601 = vsel %vm1585, 0.5, 1.0
      %v1602 = vsel %vm1586, 0.5, 1.0
      %v1603 = vsel %vm1587, 0.5, 1.0
      %v1604 = vsel %vm1588, 0.5, 1.0
      %v1605 = vsel %vm1589, 0.5, 1.0
      %v1606 = vsel %vm1590, 0.5, 1.0
      %v1607 = vsel %vm1591, 0.5, 1.0
      %v1608 = vsel %vm1576, 0.5, 0.0
      %v1609 = vsel %vm1577, 0.5, 0.0
      %v1610 = vsel %vm1578, 0.5, 0.0
      %v1611 = vsel %vm1579, 0.5, 0.0
      %v1612 = vsel %vm1580, 0.5, 0.0
      %v1613 = vsel %vm1581, 0.5, 0.0
      %v1614 = vsel %vm1582, 0.5, 0.0
      %v1615 = vsel %vm1583, 0.5, 0.0
      %v1616 = vsel %vm1584, 0.5, 0.0
      %v1617 = vsel %vm1585, 0.5, 0.0
      %v1618 = vsel %vm1586, 0.5, 0.0
      %v1619 = vsel %vm1587, 0.5, 0.0
      %v1620 = vsel %vm1588, 0.5, 0.0
      %v1621 = vsel %vm1589, 0.5, 0.0
      %v1622 = vsel %vm1590, 0.5, 0.0
      %v1623 = vsel %vm1591, 0.5, 0.0
      %v1624 = vmul.f32 %v1481, %v1592
      %v1625 = vmul.f32 %v1483, %v1592
      %v1626 = vmul.f32 %v1485, %v1593
      %v1627 = vmul.f32 %v1487, %v1593
      %v1628 = vmul.f32 %v1491, %v1594
      %v1629 = vmul.f32 %v1493, %v1594
      %v1630 = vmul.f32 %v1495, %v1595
      %v1631 = vmul.f32 %v1497, %v1595
      %v1632 = vmul.f32 %v1501, %v1596
      %v1633 = vmul.f32 %v1503, %v1596
      %v1634 = vmul.f32 %v1505, %v1597
      %v1635 = vmul.f32 %v1507, %v1597
      %v1636 = vmul.f32 %v1511, %v1598
      %v1637 = vmul.f32 %v1513, %v1598
      %v1638 = vmul.f32 %v1515, %v1599
      %v1639 = vmul.f32 %v1517, %v1599
      %v1640 = vmul.f32 %v1521, %v1600
      %v1641 = vmul.f32 %v1523, %v1600
      %v1642 = vmul.f32 %v1525, %v1601
      %v1643 = vmul.f32 %v1527, %v1601
      %v1644 = vmul.f32 %v1531, %v1602
      %v1645 = vmul.f32 %v1533, %v1602
      %v1646 = vmul.f32 %v1535, %v1603
      %v1647 = vmul.f32 %v1537, %v1603
      %v1648 = vmul.f32 %v1541, %v1604
      %v1649 = vmul.f32 %v1543, %v1604
      %v1650 = vmul.f32 %v1545, %v1605
      %v1651 = vmul.f32 %v1547, %v1605
      %v1652 = vmul.f32 %v1551, %v1606
      %v1653 = vmul.f32 %v1553, %v1606
      %v1654 = vmul.f32 %v1555, %v1607
      %v1655 = vmul.f32 %v1557, %v1607
      %v1656 = vtanh.pop %v1624
      %v1657 = vtanh.pop %v1625
      %v1658 = vtanh.pop %v1626
      %v1659 = vtanh.pop %v1627
      %v1660 = vtanh.pop %v1628
      %v1661 = vtanh.pop %v1629
      %v1662 = vtanh.pop %v1630
      %v1663 = vtanh.pop %v1631
      %v1664 = vtanh.pop %v1632
      %v1665 = vtanh.pop %v1633
      %v1666 = vtanh.pop %v1634
      %v1667 = vtanh.pop %v1635
      %v1668 = vtanh.pop %v1636
      %v1669 = vtanh.pop %v1637
      %v1670 = vtanh.pop %v1638
      %v1671 = vtanh.pop %v1639
      %v1672 = vtanh.pop %v1640
      %v1673 = vtanh.pop %v1641
      %v1674 = vtanh.pop %v1642
      %v1675 = vtanh.pop %v1643
      %v1676 = vtanh.pop %v1644
      %v1677 = vtanh.pop %v1645
      %v1678 = vtanh.pop %v1646
      %v1679 = vtanh.pop %v1647
      %v1680 = vtanh.pop %v1648
      %v1681 = vtanh.pop %v1649
      %v1682 = vtanh.pop %v1650
      %v1683 = vtanh.pop %v1651
      %v1684 = vtanh.pop %v1652
      %v1685 = vtanh.pop %v1653
      %v1686 = vtanh.pop %v1654
      %v1687 = vtanh.pop %v1655
      %v1688 = vmul.f32 %v1656, %v1592
      %v1689 = vmul.f32 %v1657, %v1592
      %v1690 = vmul.f32 %v1658, %v1593
      %v1691 = vmul.f32 %v1659, %v1593
      %v1692 = vmul.f32 %v1660, %v1594
      %v1693 = vmul.f32 %v1661, %v1594
      %v1694 = vmul.f32 %v1662, %v1595
      %v1695 = vmul.f32 %v1663, %v1595
      %v1696 = vmul.f32 %v1664, %v1596
      %v1697 = vmul.f32 %v1665, %v1596
      %v1698 = vmul.f32 %v1666, %v1597
      %v1699 = vmul.f32 %v1667, %v1597
      %v1700 = vmul.f32 %v1668, %v1598
      %v1701 = vmul.f32 %v1669, %v1598
      %v1702 = vmul.f32 %v1670, %v1599
      %v1703 = vmul.f32 %v1671, %v1599
      %v1704 = vmul.f32 %v1672, %v1600
      %v1705 = vmul.f32 %v1673, %v1600
      %v1706 = vmul.f32 %v1674, %v1601
      %v1707 = vmul.f32 %v1675, %v1601
      %v1708 = vmul.f32 %v1676, %v1602
      %v1709 = vmul.f32 %v1677, %v1602
      %v1710 = vmul.f32 %v1678, %v1603
      %v1711 = vmul.f32 %v1679, %v1603
      %v1712 = vmul.f32 %v1680, %v1604
      %v1713 = vmul.f32 %v1681, %v1604
      %v1714 = vmul.f32 %v1682, %v1605
      %v1715 = vmul.f32 %v1683, %v1605
      %v1716 = vmul.f32 %v1684, %v1606
      %v1717 = vmul.f32 %v1685, %v1606
      %v1718 = vmul.f32 %v1686, %v1607
      %v1719 = vmul.f32 %v1687, %v1607
      %v1720 = vadd.f32 %v1688, %v1608
      %v1721 = vadd.f32 %v1689, %v1608
      %v1722 = vadd.f32 %v1690, %v1609
      %v1723 = vadd.f32 %v1691, %v1609
      %v1724 = vadd.f32 %v1692, %v1610
      %v1725 = vadd.f32 %v1693, %v1610
      %v1726 = vadd.f32 %v1694, %v1611
      %v1727 = vadd.f32 %v1695, %v1611
      %v1728 = vadd.f32 %v1696, %v1612
      %v1729 = vadd.f32 %v1697, %v1612
      %v1730 = vadd.f32 %v1698, %v1613
      %v1731 = vadd.f32 %v1699, %v1613
      %v1732 = vadd.f32 %v1700, %v1614
      %v1733 = vadd.f32 %v1701, %v1614
      %v1734 = vadd.f32 %v1702, %v1615
      %v1735 = vadd.f32 %v1703, %v1615
      %v1736 = vadd.f32 %v1704, %v1616
      %v1737 = vadd.f32 %v1705, %v1616
      %v1738 = vadd.f32 %v1706, %v1617
      %v1739 = vadd.f32 %v1707, %v1617
      %v1740 = vadd.f32 %v1708, %v1618
      %v1741 = vadd.f32 %v1709, %v1618
      %v1742 = vadd.f32 %v1710, %v1619
      %v1743 = vadd.f32 %v1711, %v1619
      %v1744 = vadd.f32 %v1712, %v1620
      %v1745 = vadd.f32 %v1713, %v1620
      %v1746 = vadd.f32 %v1714, %v1621
      %v1747 = vadd.f32 %v1715, %v1621
      %v1748 = vadd.f32 %v1716, %v1622
      %v1749 = vadd.f32 %v1717, %v1622
      %v1750 = vadd.f32 %v1718, %v1623
      %v1751 = vadd.f32 %v1719, %v1623
      %v1752 = vld [vmem:[#allocation3] sm:$0xff]
      %v1753 = vld [vmem:[#allocation3 + $0x8] sm:$0xff]
      %v1754 = vld [vmem:[#allocation3 + $0x10] sm:$0xff]
      %v1755 = vld [vmem:[#allocation3 + $0x18] sm:$0xff]
      %v1756 = vld [vmem:[#allocation3 + $0x20] sm:$0xff]
      %v1757 = vld [vmem:[#allocation3 + $0x28] sm:$0xff]
      %v1758 = vld [vmem:[#allocation3 + $0x30] sm:$0xff]
      %v1759 = vld [vmem:[#allocation3 + $0x38] sm:$0xff]
      %v1760 = vmul.f32 %v1728, %v1752
      %v1761 = vmul.f32 %v1729, %v1753
      %v1762 = vmul.f32 %v1730, %v1754
      %v1763 = vmul.f32 %v1731, %v1755
      %v1764 = vmul.f32 %v1732, %v1756
      %v1765 = vmul.f32 %v1733, %v1757
      %v1766 = vmul.f32 %v1734, %v1758
      %v1767 = vmul.f32 %v1735, %v1759
      %v1768 = vmul.f32 %v1720, %v1744
      %v1769 = vmul.f32 %v1721, %v1745
      %v1770 = vmul.f32 %v1722, %v1746
      %v1771 = vmul.f32 %v1723, %v1747
      %v1772 = vmul.f32 %v1724, %v1748
      %v1773 = vmul.f32 %v1725, %v1749
      %v1774 = vmul.f32 %v1726, %v1750
      %v1775 = vmul.f32 %v1727, %v1751
      %v1776 = vadd.f32 %v1760, %v1768
      %v1777 = vadd.f32 %v1761, %v1769
      %v1778 = vadd.f32 %v1762, %v1770
      %v1779 = vadd.f32 %v1763, %v1771
      %v1780 = vadd.f32 %v1764, %v1772
      %v1781 = vadd.f32 %v1765, %v1773
      %v1782 = vadd.f32 %v1766, %v1774
      %v1783 = vadd.f32 %v1767, %v1775
      %v1784 = vtanh.pop %v1776
      %v1785 = vtanh.pop %v1777
      %v1786 = vtanh.pop %v1778
      %v1787 = vtanh.pop %v1779
      %v1788 = vtanh.pop %v1780
      %v1789 = vtanh.pop %v1781
      %v1790 = vtanh.pop %v1782
      %v1791 = vtanh.pop %v1783
      %v1792 = vmul.f32 %v1736, %v1784
      %v1793 = vmul.f32 %v1737, %v1785
      %v1794 = vmul.f32 %v1738, %v1786
      %v1795 = vmul.f32 %v1739, %v1787
      %v1796 = vmul.f32 %v1740, %v1788
      %v1797 = vmul.f32 %v1741, %v1789
      %v1798 = vmul.f32 %v1742, %v1790
      %v1799 = vmul.f32 %v1743, %v1791
      %1800 = vst [vmem:[#allocation3] sm:$0xff] %v1776
      %1801 = vst [vmem:[#allocation3 + $0x8] sm:$0xff] %v1777
      %1802 = vst [vmem:[#allocation3 + $0x10] sm:$0xff] %v1778
      %1803 = vst [vmem:[#allocation3 + $0x18] sm:$0xff] %v1779
      %1804 = vst [vmem:[#allocation3 + $0x20] sm:$0xff] %v1780
      %1805 = vst [vmem:[#allocation3 + $0x28] sm:$0xff] %v1781
      %1806 = vst [vmem:[#allocation3 + $0x30] sm:$0xff] %v1782
      %1807 = vst [vmem:[#allocation3 + $0x38] sm:$0xff] %v1783
      %1808 = vst [vmem:[#allocation2] sm:$0xff] %v1792
      %1809 = vst [vmem:[#allocation2 + $0x8] sm:$0xff] %v1793
      %1810 = vst [vmem:[#allocation2 + $0x10] sm:$0xff] %v1794
      %1811 = vst [vmem:[#allocation2 + $0x18] sm:$0xff] %v1795
      %1812 = vst [vmem:[#allocation2 + $0x20] sm:$0xff] %v1796
      %1813 = vst [vmem:[#allocation2 + $0x28] sm:$0xff] %v1797
      %1814 = vst [vmem:[#allocation2 + $0x30] sm:$0xff] %v1798
      %1815 = vst [vmem:[#allocation2 + $0x38] sm:$0xff] %v1799
      %v1816 = vpack.c.bf16 %v1794, %v1792
      %v1817 = vpack.c.bf16 %v1795, %v1793
      %v1818 = vpack.c.bf16 %v1798, %v1796
      %v1819 = vpack.c.bf16 %v1799, %v1797
      %v1820 = vld [vmem:[#allocation5] sm:$0xff]
      %v1822 = vcombine.high %v1820, %v1820
      %v1824 = vpack.c.bf16 %v1820, %v1820
      %v1825 = vpack.c.bf16 %v1822, %v1822
      %vm1826 = vcmask 1041408
      %v1828 = vsel %vm1826, %v1824, 0
      %v1830 = vsel %vm1826, %v1825, 0
      %1837 = vrot.lane.b32.xlu0 %v1816, 17
      %v1838 = vpop.permute.xlu0 %1837
      %1839 = vrot.lane.b32.xlu0 %v1817, 17
      %v1840 = vpop.permute.xlu0 %1839
      %1841 = vrot.lane.b32.xlu0 %v1818, 17
      %v1842 = vpop.permute.xlu0 %1841
      %1843 = vrot.lane.b32.xlu0 %v1819, 17
      %v1844 = vpop.permute.xlu0 %1843
      %1845 = vrot.lane.b32.xlu0 %v1828, 17
      %v1846 = vpop.permute.xlu0 %1845
      %1847 = vrot.lane.b32.xlu0 %v1830, 17
      %v1848 = vpop.permute.xlu0 %1847
      %v1849 = vsel %vm567, %v1838, %v1840
      %v1850 = vsel %vm567, %v1842, %v1844
      %v1851 = vsel %vm567, %v1846, %v1848
      %1861 = vst.msk [vmem:[#allocation7] sm:$0xff] %vm580, %v1838
      %1862 = vst [vmem:[#allocation7 + $0x8] sm:$0xff] %v1849
      %1863 = vst.msk [vmem:[#allocation7 + $0x10] sm:$0xff] %vm583, %v1840
      %1864 = vst.msk [vmem:[#allocation7 + $0x18] sm:$0xff] %vm580, %v1842
      %1865 = vst [vmem:[#allocation7 + $0x20] sm:$0xff] %v1850
      %1866 = vst.msk [vmem:[#allocation7 + $0x28] sm:$0xff] %vm583, %v1844
      %1867 = vst.msk [vmem:[#allocation7 + $0x30] sm:$0xff] %vm580, %v1846
      %1868 = vst [vmem:[#allocation7 + $0x38] sm:$0xff] %v1851
      %1869 = vst.msk [vmem:[#allocation7 + $0x40] sm:$0xff] %vm583, %v1848
      %v1870 = vld [vmem:[#allocation7] sm:$0xff]
      %v1871 = vld [vmem:[#allocation7 + $0x8] sm:$0xff]
      %v1872 = vld [vmem:[#allocation7 + $0x18] sm:$0xff]
      %v1873 = vld [vmem:[#allocation7 + $0x20] sm:$0xff]
      %v1874 = vld [vmem:[#allocation7 + $0x30] sm:$0xff]
      %v1875 = vld [vmem:[#allocation7 + $0x38] sm:$0xff]
      %v1876 = vsel %vm611, %v1870, 0
      %v1877 = vsel %vm612, %v1871, 0
      %v1878 = vsel %vm611, %v1872, 0
      %v1879 = vsel %vm612, %v1873, 0
      %v1880 = vsel %vm611, %v1874, 0
      %v1881 = vsel %vm612, %v1875, 0
      %v1882 = vld [vmem:[#allocation7 + $0x10] sm:$0xff]
      %v1883 = vld [vmem:[#allocation7 + $0x28] sm:$0xff]
      %v1884 = vld [vmem:[#allocation7 + $0x40] sm:$0xff]
      %v1885 = vsel %vm642, %v1870, 0
      %v1886 = vsel %vm643, %v1871, 0
      %v1887 = vsel %vm644, %v1882, 0
      %v1888 = vsel %vm642, %v1872, 0
      %v1889 = vsel %vm643, %v1873, 0
      %v1890 = vsel %vm644, %v1883, 0
      %v1891 = vsel %vm642, %v1874, 0
      %v1892 = vsel %vm643, %v1875, 0
      %v1893 = vsel %vm644, %v1884, 0
      %v1894 = vsel %vm660, %v1870, 0
      %v1895 = vsel %vm661, %v1871, 0
      %v1896 = vsel %vm662, %v1882, 0
      %v1897 = vsel %vm660, %v1872, 0
      %v1898 = vsel %vm661, %v1873, 0
      %v1899 = vsel %vm662, %v1883, 0
      %v1900 = vsel %vm660, %v1874, 0
      %v1901 = vsel %vm661, %v1875, 0
      %v1902 = vsel %vm662, %v1884, 0
      %v1903 = vsel %vm678, %v1870, 0
      %v1904 = vsel %vm679, %v1871, 0
      %v1905 = vsel %vm680, %v1882, 0
      %v1906 = vsel %vm678, %v1872, 0
      %v1907 = vsel %vm679, %v1873, 0
      %v1908 = vsel %vm680, %v1883, 0
      %v1909 = vsel %vm678, %v1874, 0
      %v1910 = vsel %vm679, %v1875, 0
      %v1911 = vsel %vm680, %v1884, 0
      %v1912 = vsel %vm696, %v1870, 0
      %v1913 = vsel %vm697, %v1871, 0
      %v1914 = vsel %vm698, %v1882, 0
      %v1915 = vsel %vm696, %v1872, 0
      %v1916 = vsel %vm697, %v1873, 0
      %v1917 = vsel %vm698, %v1883, 0
      %v1918 = vsel %vm696, %v1874, 0
      %v1919 = vsel %vm697, %v1875, 0
      %v1920 = vsel %vm698, %v1884, 0
      %v1921 = vsel %vm714, %v1870, 0
      %v1922 = vsel %vm715, %v1871, 0
      %v1923 = vsel %vm716, %v1882, 0
      %v1924 = vsel %vm714, %v1872, 0
      %v1925 = vsel %vm715, %v1873, 0
      %v1926 = vsel %vm716, %v1883, 0
      %v1927 = vsel %vm714, %v1874, 0
      %v1928 = vsel %vm715, %v1875, 0
      %v1929 = vsel %vm716, %v1884, 0
      %1939 = vrot.lane.b32.xlu0 %v1870, 127
      %v1940 = vpop.permute.xlu0 %1939
      %1941 = vrot.lane.b32.xlu0 %v1871, 127
      %v1942 = vpop.permute.xlu0 %1941
      %1943 = vrot.lane.b32.xlu0 %v1882, 127
      %v1944 = vpop.permute.xlu0 %1943
      %1945 = vrot.lane.b32.xlu0 %v1872, 127
      %v1946 = vpop.permute.xlu0 %1945
      %1947 = vrot.lane.b32.xlu0 %v1873, 127
      %v1948 = vpop.permute.xlu0 %1947
      %1949 = vrot.lane.b32.xlu0 %v1883, 127
      %v1950 = vpop.permute.xlu0 %1949
      %1951 = vrot.lane.b32.xlu0 %v1874, 127
      %v1952 = vpop.permute.xlu0 %1951
      %1953 = vrot.lane.b32.xlu0 %v1875, 127
      %v1954 = vpop.permute.xlu0 %1953
      %1955 = vrot.lane.b32.xlu0 %v1884, 127
      %v1956 = vpop.permute.xlu0 %1955
      %v1957 = vsel %vm753, %v1940, %v1942
      %v1958 = vsel %vm753, %v1942, %v1944
      %v1959 = vsel %vm753, %v1946, %v1948
      %v1960 = vsel %vm753, %v1948, %v1950
      %v1961 = vsel %vm753, %v1952, %v1954
      %v1962 = vsel %vm753, %v1954, %v1956
      %1978 = vrot.lane.b32.xlu0 %v1885, 126
      %v1979 = vpop.permute.xlu0 %1978
      %1980 = vrot.lane.b32.xlu0 %v1886, 126
      %v1981 = vpop.permute.xlu0 %1980
      %1982 = vrot.lane.b32.xlu0 %v1887, 126
      %v1983 = vpop.permute.xlu0 %1982
      %1984 = vrot.lane.b32.xlu0 %v1888, 126
      %v1985 = vpop.permute.xlu0 %1984
      %1986 = vrot.lane.b32.xlu0 %v1889, 126
      %v1987 = vpop.permute.xlu0 %1986
      %1988 = vrot.lane.b32.xlu0 %v1890, 126
      %v1989 = vpop.permute.xlu0 %1988
      %1990 = vrot.lane.b32.xlu0 %v1891, 126
      %v1991 = vpop.permute.xlu0 %1990
      %1992 = vrot.lane.b32.xlu0 %v1892, 126
      %v1993 = vpop.permute.xlu0 %1992
      %1994 = vrot.lane.b32.xlu0 %v1893, 126
      %v1995 = vpop.permute.xlu0 %1994
      %v1996 = vsel %vm793, %v1979, %v1981
      %v1997 = vsel %vm793, %v1981, %v1983
      %v1998 = vsel %vm793, %v1985, %v1987
      %v1999 = vsel %vm793, %v1987, %v1989
      %v2000 = vsel %vm793, %v1991, %v1993
      %v2001 = vsel %vm793, %v1993, %v1995
      %2017 = vrot.lane.b32.xlu0 %v1894, 112
      %v2018 = vpop.permute.xlu0 %2017
      %2019 = vrot.lane.b32.xlu0 %v1895, 112
      %v2020 = vpop.permute.xlu0 %2019
      %2021 = vrot.lane.b32.xlu0 %v1896, 112
      %v2022 = vpop.permute.xlu0 %2021
      %2023 = vrot.lane.b32.xlu0 %v1897, 112
      %v2024 = vpop.permute.xlu0 %2023
      %2025 = vrot.lane.b32.xlu0 %v1898, 112
      %v2026 = vpop.permute.xlu0 %2025
      %2027 = vrot.lane.b32.xlu0 %v1899, 112
      %v2028 = vpop.permute.xlu0 %2027
      %2029 = vrot.lane.b32.xlu0 %v1900, 112
      %v2030 = vpop.permute.xlu0 %2029
      %2031 = vrot.lane.b32.xlu0 %v1901, 112
      %v2032 = vpop.permute.xlu0 %2031
      %2033 = vrot.lane.b32.xlu0 %v1902, 112
      %v2034 = vpop.permute.xlu0 %2033
      %v2035 = vsel %vm833, %v2018, %v2020
      %v2036 = vsel %vm833, %v2020, %v2022
      %v2037 = vsel %vm833, %v2024, %v2026
      %v2038 = vsel %vm833, %v2026, %v2028
      %v2039 = vsel %vm833, %v2030, %v2032
      %v2040 = vsel %vm833, %v2032, %v2034
      %2047 = vrot.lane.b32.xlu0 %v1870, 111
      %v2048 = vpop.permute.xlu0 %2047
      %2049 = vrot.lane.b32.xlu0 %v1871, 111
      %v2050 = vpop.permute.xlu0 %2049
      %2051 = vrot.lane.b32.xlu0 %v1882, 111
      %v2052 = vpop.permute.xlu0 %2051
      %2053 = vrot.lane.b32.xlu0 %v1872, 111
      %v2054 = vpop.permute.xlu0 %2053
      %2055 = vrot.lane.b32.xlu0 %v1873, 111
      %v2056 = vpop.permute.xlu0 %2055
      %2057 = vrot.lane.b32.xlu0 %v1883, 111
      %v2058 = vpop.permute.xlu0 %2057
      %2059 = vrot.lane.b32.xlu0 %v1874, 111
      %v2060 = vpop.permute.xlu0 %2059
      %2061 = vrot.lane.b32.xlu0 %v1875, 111
      %v2062 = vpop.permute.xlu0 %2061
      %2063 = vrot.lane.b32.xlu0 %v1884, 111
      %v2064 = vpop.permute.xlu0 %2063
      %v2065 = vsel %vm864, %v2048, %v2050
      %v2066 = vsel %vm864, %v2050, %v2052
      %v2067 = vsel %vm864, %v2054, %v2056
      %v2068 = vsel %vm864, %v2056, %v2058
      %v2069 = vsel %vm864, %v2060, %v2062
      %v2070 = vsel %vm864, %v2062, %v2064
      %2086 = vrot.lane.b32.xlu0 %v1903, 110
      %v2087 = vpop.permute.xlu0 %2086
      %2088 = vrot.lane.b32.xlu0 %v1904, 110
      %v2089 = vpop.permute.xlu0 %2088
      %2090 = vrot.lane.b32.xlu0 %v1905, 110
      %v2091 = vpop.permute.xlu0 %2090
      %2092 = vrot.lane.b32.xlu0 %v1906, 110
      %v2093 = vpop.permute.xlu0 %2092
      %2094 = vrot.lane.b32.xlu0 %v1907, 110
      %v2095 = vpop.permute.xlu0 %2094
      %2096 = vrot.lane.b32.xlu0 %v1908, 110
      %v2097 = vpop.permute.xlu0 %2096
      %2098 = vrot.lane.b32.xlu0 %v1909, 110
      %v2099 = vpop.permute.xlu0 %2098
      %2100 = vrot.lane.b32.xlu0 %v1910, 110
      %v2101 = vpop.permute.xlu0 %2100
      %2102 = vrot.lane.b32.xlu0 %v1911, 110
      %v2103 = vpop.permute.xlu0 %2102
      %v2104 = vsel %vm904, %v2087, %v2089
      %v2105 = vsel %vm904, %v2089, %v2091
      %v2106 = vsel %vm904, %v2093, %v2095
      %v2107 = vsel %vm904, %v2095, %v2097
      %v2108 = vsel %vm904, %v2099, %v2101
      %v2109 = vsel %vm904, %v2101, %v2103
      %2125 = vrot.lane.b32.xlu0 %v1912, 96
      %v2126 = vpop.permute.xlu0 %2125
      %2127 = vrot.lane.b32.xlu0 %v1913, 96
      %v2128 = vpop.permute.xlu0 %2127
      %2129 = vrot.lane.b32.xlu0 %v1914, 96
      %v2130 = vpop.permute.xlu0 %2129
      %2131 = vrot.lane.b32.xlu0 %v1915, 96
      %v2132 = vpop.permute.xlu0 %2131
      %2133 = vrot.lane.b32.xlu0 %v1916, 96
      %v2134 = vpop.permute.xlu0 %2133
      %2135 = vrot.lane.b32.xlu0 %v1917, 96
      %v2136 = vpop.permute.xlu0 %2135
      %2137 = vrot.lane.b32.xlu0 %v1918, 96
      %v2138 = vpop.permute.xlu0 %2137
      %2139 = vrot.lane.b32.xlu0 %v1919, 96
      %v2140 = vpop.permute.xlu0 %2139
      %2141 = vrot.lane.b32.xlu0 %v1920, 96
      %v2142 = vpop.permute.xlu0 %2141
      %v2143 = vsel %vm944, %v2126, %v2128
      %v2144 = vsel %vm944, %v2128, %v2130
      %v2145 = vsel %vm944, %v2132, %v2134
      %v2146 = vsel %vm944, %v2134, %v2136
      %v2147 = vsel %vm944, %v2138, %v2140
      %v2148 = vsel %vm944, %v2140, %v2142
      %2155 = vrot.lane.b32.xlu0 %v1870, 95
      %v2156 = vpop.permute.xlu0 %2155
      %2157 = vrot.lane.b32.xlu0 %v1871, 95
      %v2158 = vpop.permute.xlu0 %2157
      %2159 = vrot.lane.b32.xlu0 %v1882, 95
      %v2160 = vpop.permute.xlu0 %2159
      %2161 = vrot.lane.b32.xlu0 %v1872, 95
      %v2162 = vpop.permute.xlu0 %2161
      %2163 = vrot.lane.b32.xlu0 %v1873, 95
      %v2164 = vpop.permute.xlu0 %2163
      %2165 = vrot.lane.b32.xlu0 %v1883, 95
      %v2166 = vpop.permute.xlu0 %2165
      %2167 = vrot.lane.b32.xlu0 %v1874, 95
      %v2168 = vpop.permute.xlu0 %2167
      %2169 = vrot.lane.b32.xlu0 %v1875, 95
      %v2170 = vpop.permute.xlu0 %2169
      %2171 = vrot.lane.b32.xlu0 %v1884, 95
      %v2172 = vpop.permute.xlu0 %2171
      %v2173 = vsel %vm975, %v2156, %v2158
      %v2174 = vsel %vm975, %v2158, %v2160
      %v2175 = vsel %vm975, %v2162, %v2164
      %v2176 = vsel %vm975, %v2164, %v2166
      %v2177 = vsel %vm975, %v2168, %v2170
      %v2178 = vsel %vm975, %v2170, %v2172
      %2194 = vrot.lane.b32.xlu0 %v1921, 94
      %v2195 = vpop.permute.xlu0 %2194
      %2196 = vrot.lane.b32.xlu0 %v1922, 94
      %v2197 = vpop.permute.xlu0 %2196
      %2198 = vrot.lane.b32.xlu0 %v1923, 94
      %v2199 = vpop.permute.xlu0 %2198
      %2200 = vrot.lane.b32.xlu0 %v1924, 94
      %v2201 = vpop.permute.xlu0 %2200
      %2202 = vrot.lane.b32.xlu0 %v1925, 94
      %v2203 = vpop.permute.xlu0 %2202
      %2204 = vrot.lane.b32.xlu0 %v1926, 94
      %v2205 = vpop.permute.xlu0 %2204
      %2206 = vrot.lane.b32.xlu0 %v1927, 94
      %v2207 = vpop.permute.xlu0 %2206
      %2208 = vrot.lane.b32.xlu0 %v1928, 94
      %v2209 = vpop.permute.xlu0 %2208
      %2210 = vrot.lane.b32.xlu0 %v1929, 94
      %v2211 = vpop.permute.xlu0 %2210
      %v2212 = vsel %vm1015, %v2195, %v2197
      %v2213 = vsel %vm1015, %v2197, %v2199
      %v2214 = vsel %vm1015, %v2201, %v2203
      %v2215 = vsel %vm1015, %v2203, %v2205
      %v2216 = vsel %vm1015, %v2207, %v2209
      %v2217 = vsel %vm1015, %v2209, %v2211
      %v2224 = vld [vmem:[%s5] sm:$0xff]
      %v2225 = vld [vmem:[%s5 + $0x8] sm:$0xff]
      %v2226 = vld [vmem:[%s5 + $0x10] sm:$0xff]
      %v2227 = vld [vmem:[%s5 + $0x18] sm:$0xff]
      %v2228 = vld [vmem:[%s6] sm:$0xff]
      %v2229 = vld [vmem:[%s6 + $0x8] sm:$0xff]
      %2231 = vset.pattern.permute.xlu0 0
      %2232 = vperm.xlu0 %2231, %v2228
      %v2233 = vpop.permute.xlu0 %2232
      %2236 = vset.pattern.permute.xlu0 0
      %2237 = vperm.xlu0 %2236, %v2229
      %v2238 = vpop.permute.xlu0 %2237
      %v2244 = vunpack.c.l.b16 %v2224
      %v2245 = vunpack.c.h.b16 %v2224
      %v2246 = vunpack.c.l.b16 %v2225
      %v2247 = vunpack.c.h.b16 %v2225
      %v2248 = vunpack.c.l.b16 %v2226
      %v2249 = vunpack.c.h.b16 %v2226
      %v2250 = vunpack.c.l.b16 %v2227
      %v2251 = vunpack.c.h.b16 %v2227
      %v2252 = vpack.c.b16 %v2248, %v2244
      %v2253 = vpack.c.b16 %v2249, %v2245
      %v2254 = vpack.c.b16 %v2250, %v2246
      %v2255 = vpack.c.b16 %v2251, %v2247
      %v2260 = vsel %vm1308, %v2255, 0
      %2262 = vmatprep.subr.bf16.mxu0 %v1877
      %2263 = vmatpush1.bf16.msra.mxu0 %v1876
      %2264 = vmatprep.subr.bf16.mxu0 %v1879
      %2265 = vmatpush1.bf16.msra.mxu0 %v1878
      %2266 = vmatprep.subr.bf16.mxu0 %v1881
      %2267 = vmatpush1.bf16.msra.mxu0 %v1880
      %2268 = vmatprep.subr.bf16.mxu0 %v1958
      %2269 = vmatpush1.bf16.msra.mxu0 %v1957
      %2270 = vmatprep.subr.bf16.mxu0 %v1960
      %2271 = vmatpush1.bf16.msra.mxu0 %v1959
      %2272 = vmatprep.subr.bf16.mxu0 %v1962
      %2273 = vmatpush1.bf16.msra.mxu0 %v1961
      %2274 = vmatprep.subr.bf16.mxu0 %v1997
      %2275 = vmatpush1.bf16.msra.mxu0 %v1996
      %2276 = vmatprep.subr.bf16.mxu0 %v1999
      %2277 = vmatpush1.bf16.msra.mxu0 %v1998
      %2278 = vmatprep.subr.bf16.mxu0 %v2001
      %2279 = vmatpush1.bf16.msra.mxu0 %v2000
      %2280 = vmatprep.subr.bf16.mxu0 %v2036
      %2281 = vmatpush1.bf16.msra.mxu0 %v2035
      %2282 = vmatprep.subr.bf16.mxu0 %v2038
      %2283 = vmatpush1.bf16.msra.mxu0 %v2037
      %2284 = vmatprep.subr.bf16.mxu0 %v2040
      %2285 = vmatpush1.bf16.msra.mxu0 %v2039
      %2286 = vmatprep.subr.bf16.mxu0 %v2066
      %2287 = vmatpush1.bf16.msra.mxu0 %v2065
      %2288 = vmatprep.subr.bf16.mxu0 %v2068
      %2289 = vmatpush1.bf16.msra.mxu0 %v2067
      %2290 = vmatprep.subr.bf16.mxu0 %v2070
      %2291 = vmatpush1.bf16.msra.mxu0 %v2069
      %2292 = vmatprep.subr.bf16.mxu0 %v2105
      %2293 = vmatpush1.bf16.msra.mxu0 %v2104
      %2294 = vmatprep.mubr.bf16.mxu0 %v2253
      %2295 = vmatmul.mubr.bf16.gmra.mrb[0].mxu0 %v2252
      %v2296 = vpop.f32.mrb[0].mxu0
      %v2297 = vadd.f32 %v2233, %v2296
      %v2298 = vpop.f32.mrb[0].mxu0
      %v2299 = vadd.f32 %v2233, %v2298
      %v2300 = vpop.f32.mrb[0].mxu0
      %v2301 = vadd.f32 %v2238, %v2300
      %v2302 = vpop.f32.mrb[0].mxu0
      %v2303 = vadd.f32 %v2238, %v2302
      %2304 = vdwg.mxu0
      %2305 = vmatprep.subr.bf16.mxu0 %v2107
      %2306 = vmatpush1.bf16.msra.mxu0 %v2106
      %2307 = vmatprep.subr.bf16.mxu0 %v2109
      %2308 = vmatpush1.bf16.msra.mxu0 %v2108
      %2309 = vmatprep.subr.bf16.mxu0 %v2144
      %2310 = vmatpush1.bf16.msra.mxu0 %v2143
      %2311 = vmatprep.subr.bf16.mxu0 %v2146
      %2312 = vmatpush1.bf16.msra.mxu0 %v2145
      %2313 = vmatprep.subr.bf16.mxu0 %v2148
      %2314 = vmatpush1.bf16.msra.mxu0 %v2147
      %2315 = vmatprep.subr.bf16.mxu0 %v2174
      %2316 = vmatpush1.bf16.msra.mxu0 %v2173
      %2317 = vmatprep.subr.bf16.mxu0 %v2176
      %2318 = vmatpush1.bf16.msra.mxu0 %v2175
      %2319 = vmatprep.subr.bf16.mxu0 %v2178
      %2320 = vmatpush1.bf16.msra.mxu0 %v2177
      %2321 = vmatprep.subr.bf16.mxu0 %v2213
      %2322 = vmatpush1.bf16.msra.mxu0 %v2212
      %2323 = vmatprep.subr.bf16.mxu0 %v2215
      %2324 = vmatpush1.bf16.msra.mxu0 %v2214
      %2325 = vmatprep.subr.bf16.mxu0 %v2217
      %2326 = vmatpush1.bf16.msra.mxu0 %v2216
      %2327 = vmatprep.subr.bf16.mxu0 0
      %2328 = vmatpush1.bf16.msra.mxu0 0
      %2329 = vmatprep.subr.bf16.mxu0 0
      %2330 = vmatpush1.bf16.msra.mxu0 0
      %2331 = vmatprep.subr.bf16.mxu0 0
      %2332 = vmatpush1.bf16.msra.mxu0 0
      %2333 = vmatprep.subr.bf16.mxu0 0
      %2334 = vmatpush1.bf16.msra.mxu0 0
      %2335 = vmatprep.subr.bf16.mxu0 0
      %2336 = vmatpush1.bf16.msra.mxu0 0
      %2337 = vmatprep.mubr.bf16.mxu0 %v2260
      %2338 = vmatmul.mubr.bf16.gmra.mrb[0].mxu0 %v2254
      %v2339 = vpop.f32.mrb[0].mxu0
      %v2340 = vadd.f32 %v2297, %v2339
      %v2341 = vpop.f32.mrb[0].mxu0
      %v2342 = vadd.f32 %v2299, %v2341
      %v2343 = vpop.f32.mrb[0].mxu0
      %v2344 = vadd.f32 %v2301, %v2343
      %v2345 = vpop.f32.mrb[0].mxu0
      %v2346 = vadd.f32 %v2303, %v2345
      %2347 = vdwg.mxu0
      %vm2348 = vcmp.lt.s32.totalorder %v1560, 12
      %vm2349 = vcmp.lt.s32.totalorder %v1561, 12
      %v2350 = vsel %vm2348, 0.5, 1.0
      %v2351 = vsel %vm2349, 0.5, 1.0
      %v2352 = vsel %vm2348, 0.5, 0.0
      %v2353 = vsel %vm2349, 0.5, 0.0
      %v2354 = vmul.f32 %v2340, %v2350
      %v2355 = vmul.f32 %v2342, %v2350
      %v2356 = vmul.f32 %v2344, %v2351
      %v2357 = vmul.f32 %v2346, %v2351
      %v2358 = vtanh.pop %v2354
      %v2359 = vtanh.pop %v2355
      %v2360 = vtanh.pop %v2356
      %v2361 = vtanh.pop %v2357
      %v2362 = vmul.f32 %v2358, %v2350
      %v2363 = vmul.f32 %v2359, %v2350
      %v2364 = vmul.f32 %v2360, %v2351
      %v2365 = vmul.f32 %v2361, %v2351
      %v2366 = vadd.f32 %v2362, %v2352
      %v2367 = vadd.f32 %v2363, %v2352
      %v2368 = vadd.f32 %v2364, %v2353
      %v2369 = vadd.f32 %v2365, %v2353
      %v2370 = vld [vmem:[#allocation6] sm:$0xff]
      %v2372 = vcombine.low %v2370, %v2370
      %v2374 = vmul.f32 %v2366, %v2372
      %v2375 = vmul.f32 %v2367, %v2370
      %v2378 = vrot.slane %v2368, 4
      %v2379 = vrot.slane %v2369, 4
      %v2382 = vmul.f32 %v2366, %v2378
      %v2383 = vmul.f32 %v2367, %v2379
      %v2386 = vrot.slane %v2382, 4
      %v2387 = vrot.slane %v2383, 4
      %v2390 = vadd.f32 %v2374, %v2386
      %v2391 = vadd.f32 %v2375, %v2387
      %v2392 = vtanh.pop %v2390
      %v2393 = vtanh.pop %v2391
      %v2396 = vrot.slane %v2392, 4
      %v2397 = vrot.slane %v2393, 4
      %v2400 = vmul.f32 %v2368, %v2396
      %v2401 = vmul.f32 %v2369, %v2397
      %v2404 = vcombine.high %v2390, %v2391
      %2406 = vst [vmem:[#allocation6] sm:$0xff] %v2404
      %v2409 = vcombine.low %v2400, %v2401
      %2411 = vst [vmem:[#allocation5] sm:$0xff] %v2409
      %v2412 = vmax.f32 %v2400, 0.0
      %v2413 = vmax.f32 %v2401, 0.0
      %v2416 = vcombine.low %v2412, %v2413
      %2418 = vst [vmem:[%s391] sm:$0xff] %v2416
      %s2419 = ssub.s32 %s23, 2
      %p2420 = scmp.gt.s32.totalorder %s2419, 0
      %s2421 = scalar_select %p2420, %s2419, 0
      %p2422 = scmp.lt.s32.totalorder %s2421, 3
      %s2423 = scalar_select %p2422, %s2421, 3
      %p2424 = scmp.lt.s32.totalorder %s22, 1
      %s2425 = scalar_select %p2424, %s22, 1
      %s2426 = smul.addr %s2425, 2
      %s2427 = smul.addr %s2423, 4
      %s2428 = sadd.s32 %s2426, %s2427
      %s2429 = smul.addr %s2428, 4
      %s2430 = scalar_lea.vmem %s7, %s2429
      // Predicated region
      $region53: #{convlstm_en_forward.1} parent=47 // pred_check
        %p2431 = pneg %p226
      $region54: #{convlstm_en_forward.1} parent=47 // pred_check_branch
        %2433 = sbr.rel (%p2431) target = $region56
      $region55: #{convlstm_en_forward.1} parent=47 // pred_region
        %s2434 = ssub.s32 %s23, 2
        %p2435 = scmp.gt.s32.totalorder %s2434, 0
        %s2436 = scalar_select %p2435, %s2434, 0
      $region56: #{convlstm_en_forward.1} parent=47 // pred_fallthru
        _
    $region48: #{convlstm_en_forward.1} parent=5 // pred_fallthru
      _
    %p2437 = scmp.le.s32.totalorder 2, %s13
    // Predicated region
    $region57: #{convlstm_en_forward.1} parent=5 // pred_check
      %p2438 = pneg %p2437
    $region58: #{convlstm_en_forward.1} parent=5 // pred_check_branch
      %2440 = sbr.rel (%p2438) target = $region60
    $region59: #{convlstm_en_forward.1} parent=5 // pred_region
      %s2441 = ssub.s32 %s13, 2
      // Predicated region
      $region61: #{convlstm_en_forward.1} parent=59 // pred_check
        %p2442 = pneg %p232
      $region62: #{convlstm_en_forward.1} parent=59 // pred_check_branch
        %2444 = sbr.rel (%p2442) target = $region64
      $region63: #{convlstm_en_forward.1} parent=59 // pred_region
        %s2445 = ssub.s32 %s25, 2
        %p2446 = scmp.gt.s32.totalorder %s2445, 0
        %s2447 = scalar_select %p2446, %s2445, 0
        %p2448 = scmp.lt.s32.totalorder %s2447, 3
        %s2449 = scalar_select %p2448, %s2447, 3
        %p2450 = scmp.lt.s32.totalorder %s24, 1
        %s2451 = scalar_select %p2450, %s24, 1
        %s2452 = smul.addr %s2451, 2
        %s2453 = smul.addr %s2449, 4
        %s2454 = sadd.s32 %s2452, %s2453
        %s2455 = smul.addr %s2454, 4
        %s2456 = scalar_lea.vmem %s7, %s2455
      $region64: #{convlstm_en_forward.1} parent=59 // pred_fallthru
        _
    $region60: #{convlstm_en_forward.1} parent=5 // pred_fallthru
      _
  $region6: #{convlstm_en_forward.1} parent=0 // loop_footer
    %s17 = sadd.s32 1, %s13
  $region7: #{convlstm_en_forward.1} parent=0 // loop_footer_branch
    %12 = sbr.rel target = $region3
  $region8: #{convlstm_en_forward.1} parent=0 // loop_exit
    _

</llo_original>
